<compile_context>
chip_gen: v7x
topology: tpu7x:2x2x1
jax: 0.10.0
libtpu: 0.0.40
codegen_flags: <defaults>
</compile_context>

<pallas_src>
import jax
import jax.numpy as jnp
from jax.experimental import pallas as pl
from jax.experimental.pallas import tpu as pltpu

LN_EPS = 1e-5
LRELU_SLOPE = 0.02


# ---------------- fused Pallas kernel ----------------------------------------------

def _build_vae_kernel(n_enc: int, n_dec: int):
    """Fused VAE forward kernel.

    Ref order:
      x, eps,
      [enc_i: w(bf16), slab(8,fan_out) f32] * n_enc,
      head_w(bf16, fan_in x 4), head_b(1,4),
      [dec_i: w(bf16), slab] * n_dec,
      out_w(bf16), out_b(1,in_channel),
      (outputs) small(batch,8) [mu|logvar|z|pad], x_recon(batch,in_channel)
    """

    def kernel(*refs):
        i = 0
        x_ref = refs[i]; i += 1
        eps_ref = refs[i]; i += 1
        enc = [(refs[i + 2 * k], refs[i + 2 * k + 1]) for k in range(n_enc)]
        i += 2 * n_enc
        head_w, head_b = refs[i], refs[i + 1]; i += 2
        dec = [(refs[i + 2 * k], refs[i + 2 * k + 1]) for k in range(n_dec)]
        i += 2 * n_dec
        out_w, out_b = refs[i], refs[i + 1]; i += 2
        small_out, xr_out = refs[i], refs[i + 1]

        def block(h, w_ref, p_ref):
            # Linear -> LayerNorm (two-pass stats) -> LeakyReLU(0.02)
            w = w_ref[...].astype(jnp.float32)       # bf16 storage, f32 math
            bias = p_ref[0:1, :]                     # packed slab: row0=b
            gamma = p_ref[1:2, :]                    #              row1=ln weight
            beta = p_ref[2:3, :]                     #              row2=ln bias
            y = jnp.dot(h, w, preferred_element_type=jnp.float32) + bias
            mean = jnp.mean(y, axis=-1, keepdims=True)
            c = y - mean
            var = jnp.mean(c * c, axis=-1, keepdims=True)
            yn = c * jax.lax.rsqrt(var + LN_EPS) * gamma + beta
            return jnp.where(yn >= 0, yn, LRELU_SLOPE * yn)

        # encoder (activations stay in VMEM/vregs throughout)
        h = x_ref[...]
        for w_ref, p_ref in enc:
            h = block(h, w_ref, p_ref)

        # merged latent heads (cols 0:2 = mu, 2:4 = logvar) + reparameterization
        hl = jnp.dot(h, head_w[...].astype(jnp.float32),
                     preferred_element_type=jnp.float32) + head_b[...]
        mu = hl[:, 0:2]
        logvar = hl[:, 2:4]
        z = mu + jnp.exp(0.5 * logvar) * eps_ref[...]

        # decoder
        d = z
        for w_ref, p_ref in dec:
            d = block(d, w_ref, p_ref)

        # final Linear + Softmax(dim=-1), exact division
        y = jnp.dot(d, out_w[...].astype(jnp.float32),
                    preferred_element_type=jnp.float32) + out_b[...]
        m = jnp.max(y, axis=-1, keepdims=True)
        e = jnp.exp(y - m)
        xr = e / jnp.sum(e, axis=-1, keepdims=True)

        # pack the three tiny outputs into one lane-contiguous store
        small_out[...] = jnp.concatenate([mu, logvar, z, jnp.zeros_like(mu)], axis=-1)
        xr_out[...] = xr

    return kernel


# ---------------- wrapper: single pallas_call, everything in VMEM ------------------

def vae_forward(params, x, eps):
    batch = x.shape[0]
    in_channel = params["out"][0].shape[1]
    n_enc = len(params["encoder"])
    n_dec = len(params["decoder"])

    inputs = [x, eps]
    for w, slab in params["encoder"]:
        inputs += [w, slab]
    inputs += list(params["head"])
    for w, slab in params["decoder"]:
        inputs += [w, slab]
    inputs += list(params["out"])

    out_shapes = (
        jax.ShapeDtypeStruct((batch, 8), jnp.float32),           # mu|logvar|z|pad
        jax.ShapeDtypeStruct((batch, in_channel), jnp.float32),  # x_recon
    )
    vmem = pl.BlockSpec(memory_space=pltpu.MemorySpace.VMEM)
    small, x_recon = pl.pallas_call(
        _build_vae_kernel(n_enc, n_dec),
        out_shape=out_shapes,
        in_specs=[vmem] * len(inputs),
        out_specs=tuple(vmem for _ in out_shapes),
    )(*inputs)

    mu = small[:, 0:2]
    logvar = small[:, 2:4]
    z = small[:, 4:6]
    return mu, logvar, z, x_recon


# ---------------- deterministic parameter construction (glue, plain JAX) -----------

def _init_linear(key, fan_in, fan_out):
    k1, k2 = jax.random.split(key)
    bound = 1.0 / (fan_in ** 0.5)
    w = jax.random.uniform(k1, (fan_in, fan_out), jnp.float32, -bound, bound)
    b = jax.random.uniform(k2, (1, fan_out), jnp.float32, -bound, bound)
    return w, b


def _init_block(key, fan_in, fan_out):
    # One bf16 weight + one (8, fan_out) f32 slab: row0=bias, row1=LN gamma, row2=LN beta.
    w, b = _init_linear(key, fan_in, fan_out)
    slab = jnp.zeros((8, fan_out), jnp.float32)
    slab = slab.at[0, :].set(b[0])
    slab = slab.at[1, :].set(1.0)          # LayerNorm weight (gamma)
    # row 2 stays zero -> LayerNorm bias (beta)
    return (w.astype(jnp.bfloat16), slab)


def init_params(key, in_channel, hls):
    keys = jax.random.split(key, 16)
    ki = iter(keys)
    params = {}
    # encoder blocks: in_channel -> hls[0] -> hls[1] -> hls[2]
    enc_dims = (in_channel,) + tuple(hls)
    params["encoder"] = [
        _init_block(next(ki), enc_dims[i], enc_dims[i + 1]) for i in range(len(hls))
    ]
    # latent heads, merged into a single (hls[-1], 4) weight / (1, 4) bias
    mu_w, mu_b = _init_linear(next(ki), hls[-1], 2)
    lv_w, lv_b = _init_linear(next(ki), hls[-1], 2)
    head_w = jnp.concatenate([mu_w, lv_w], axis=1).astype(jnp.bfloat16)
    head_b = jnp.concatenate([mu_b, lv_b], axis=1)
    params["head"] = (head_w, head_b)
    # decoder blocks: 2 -> hls[-1] -> ... -> hls[0]
    dec = [_init_block(next(ki), 2, hls[-1])]
    for i in range(len(hls) - 1, 0, -1):
        dec.append(_init_block(next(ki), hls[i], hls[i - 1]))
    params["decoder"] = dec
    # final Linear(hls[0], in_channel) + Softmax
    ow, obias = _init_linear(next(ki), hls[0], in_channel)
    params["out"] = (ow.astype(jnp.bfloat16), obias)
    return params


# ---------------- main --------------------------------------------------------------

if __name__ == "__main__":
    in_channel = 32
    hls = (512, 256, 128)
    batch = 8

    key = jax.random.PRNGKey(0)
    kp, kx, ke = jax.random.split(key, 3)

    params = init_params(kp, in_channel, hls)
    x = jax.random.normal(kx, (batch, in_channel), jnp.float32)
    # torch.randn(mu.size()) equivalent: sampled outside the kernel, fed in.
    eps = jax.random.normal(ke, (batch, 2), jnp.float32)

    fwd = jax.jit(vae_forward)
    mu, logvar, z, x_recon = fwd(params, x, eps)
    jax.block_until_ready((mu, logvar, z, x_recon))

    assert mu.shape == (batch, 2)
    assert logvar.shape == (batch, 2)
    assert z.shape == (batch, 2)
    assert x_recon.shape == (batch, in_channel)
    # softmax rows sum to 1 (exact division in-kernel)
    assert bool(jnp.all(jnp.abs(jnp.sum(x_recon, axis=-1) - 1.0) < 1e-4))
    # reparameterization consistency
    assert bool(jnp.allclose(z, mu + jnp.exp(0.5 * logvar) * eps, atol=1e-5))

    print("KERNEL_OK")
</pallas_src>

<mosaic_0001>
module attributes {stable_mosaic.version = 11 : i64} {
  func.func @kernel(%arg0: memref<8x32xf32, #tpu.memory_space<vmem>>, %arg1: memref<8x2xf32, #tpu.memory_space<vmem>>, %arg2: memref<32x512xbf16, #tpu.memory_space<vmem>>, %arg3: memref<8x512xf32, #tpu.memory_space<vmem>>, %arg4: memref<512x256xbf16, #tpu.memory_space<vmem>>, %arg5: memref<8x256xf32, #tpu.memory_space<vmem>>, %arg6: memref<256x128xbf16, #tpu.memory_space<vmem>>, %arg7: memref<8x128xf32, #tpu.memory_space<vmem>>, %arg8: memref<128x4xbf16, #tpu.memory_space<vmem>>, %arg9: memref<1x4xf32, #tpu.memory_space<vmem>>, %arg10: memref<2x128xbf16, #tpu.memory_space<vmem>>, %arg11: memref<8x128xf32, #tpu.memory_space<vmem>>, %arg12: memref<128x256xbf16, #tpu.memory_space<vmem>>, %arg13: memref<8x256xf32, #tpu.memory_space<vmem>>, %arg14: memref<256x512xbf16, #tpu.memory_space<vmem>>, %arg15: memref<8x512xf32, #tpu.memory_space<vmem>>, %arg16: memref<512x32xbf16, #tpu.memory_space<vmem>>, %arg17: memref<1x32xf32, #tpu.memory_space<vmem>>, %arg18: memref<8x8xf32, #tpu.memory_space<vmem>>, %arg19: memref<8x32xf32, #tpu.memory_space<vmem>>) attributes {dimension_semantics = [], scalar_prefetch = 0 : i64, scratch_operands = 0 : i64, tpu.core_type = #tpu.core_type<tc>} {
    %c0 = arith.constant 0 : index
    %c0_0 = arith.constant 0 : index
    %0 = vector.load %arg0[%c0, %c0_0] : memref<8x32xf32, #tpu.memory_space<vmem>>, vector<8x32xf32>
    %c0_1 = arith.constant 0 : index
    %c0_2 = arith.constant 0 : index
    %1 = vector.load %arg2[%c0_1, %c0_2] : memref<32x512xbf16, #tpu.memory_space<vmem>>, vector<32x512xbf16>
    %2 = arith.extf %1 : vector<32x512xbf16> to vector<32x512xf32>
    %c0_3 = arith.constant 0 : index
    %c0_4 = arith.constant 0 : index
    %3 = vector.load %arg3[%c0_3, %c0_4] : memref<8x512xf32, #tpu.memory_space<vmem>>, vector<1x512xf32>
    %c1 = arith.constant 1 : index
    %c0_5 = arith.constant 0 : index
    %4 = vector.load %arg3[%c1, %c0_5] : memref<8x512xf32, #tpu.memory_space<vmem>>, vector<1x512xf32>
    %c2 = arith.constant 2 : index
    %c0_6 = arith.constant 0 : index
    %5 = vector.load %arg3[%c2, %c0_6] : memref<8x512xf32, #tpu.memory_space<vmem>>, vector<1x512xf32>
    %cst = arith.constant dense<0.000000e+00> : vector<8x512xf32>
    %6 = tpu.matmul %0, %2, %cst {dimension_numbers = #tpu.dot_dimension_numbers<[1], [0], [0], [1], [0, 0, 1, 1], [], []>} : vector<8x32xf32>, vector<32x512xf32>, vector<8x512xf32> -> vector<8x512xf32>
    %7 = vector.broadcast %3 : vector<1x512xf32> to vector<8x512xf32>
    %8 = arith.addf %6, %7 : vector<8x512xf32>
    %cst_7 = arith.constant dense<0.000000e+00> : vector<8xf32>
    %9 = vector.multi_reduction <add>, %8, %cst_7 [1] : vector<8x512xf32> to vector<8xf32>
    %10 = vector.shape_cast %9 : vector<8xf32> to vector<8x1xf32>
    %cst_8 = arith.constant 5.120000e+02 : f32
    %11 = vector.broadcast %cst_8 : f32 to vector<8x1xf32>
    %12 = arith.divf %10, %11 : vector<8x1xf32>
    %13 = vector.broadcast %12 : vector<8x1xf32> to vector<8x512xf32>
    %14 = arith.subf %8, %13 : vector<8x512xf32>
    %15 = arith.mulf %14, %14 : vector<8x512xf32>
    %cst_9 = arith.constant dense<0.000000e+00> : vector<8xf32>
    %16 = vector.multi_reduction <add>, %15, %cst_9 [1] : vector<8x512xf32> to vector<8xf32>
    %17 = vector.shape_cast %16 : vector<8xf32> to vector<8x1xf32>
    %cst_10 = arith.constant 5.120000e+02 : f32
    %18 = vector.broadcast %cst_10 : f32 to vector<8x1xf32>
    %19 = arith.divf %17, %18 : vector<8x1xf32>
    %cst_11 = arith.constant 9.99999974E-6 : f32
    %20 = vector.broadcast %cst_11 : f32 to vector<8x1xf32>
    %21 = arith.addf %19, %20 : vector<8x1xf32>
    %22 = math.rsqrt %21 : vector<8x1xf32>
    %23 = vector.broadcast %22 : vector<8x1xf32> to vector<8x512xf32>
    %24 = arith.mulf %14, %23 : vector<8x512xf32>
    %25 = vector.broadcast %4 : vector<1x512xf32> to vector<8x512xf32>
    %26 = arith.mulf %24, %25 : vector<8x512xf32>
    %27 = vector.broadcast %5 : vector<1x512xf32> to vector<8x512xf32>
    %28 = arith.addf %26, %27 : vector<8x512xf32>
    %cst_12 = arith.constant 0.000000e+00 : f32
    %29 = vector.broadcast %cst_12 : f32 to vector<8x512xf32>
    %30 = arith.cmpf oge, %28, %29 : vector<8x512xf32>
    %cst_13 = arith.constant 2.000000e-02 : f32
    %31 = vector.broadcast %cst_13 : f32 to vector<8x512xf32>
    %32 = arith.mulf %31, %28 : vector<8x512xf32>
    %33 = arith.select %30, %28, %32 : vector<8x512xi1>, vector<8x512xf32>
    %c0_14 = arith.constant 0 : index
    %c0_15 = arith.constant 0 : index
    %34 = vector.load %arg4[%c0_14, %c0_15] : memref<512x256xbf16, #tpu.memory_space<vmem>>, vector<512x256xbf16>
    %35 = arith.extf %34 : vector<512x256xbf16> to vector<512x256xf32>
    %c0_16 = arith.constant 0 : index
    %c0_17 = arith.constant 0 : index
    %36 = vector.load %arg5[%c0_16, %c0_17] : memref<8x256xf32, #tpu.memory_space<vmem>>, vector<1x256xf32>
    %c1_18 = arith.constant 1 : index
    %c0_19 = arith.constant 0 : index
    %37 = vector.load %arg5[%c1_18, %c0_19] : memref<8x256xf32, #tpu.memory_space<vmem>>, vector<1x256xf32>
    %c2_20 = arith.constant 2 : index
    %c0_21 = arith.constant 0 : index
    %38 = vector.load %arg5[%c2_20, %c0_21] : memref<8x256xf32, #tpu.memory_space<vmem>>, vector<1x256xf32>
    %cst_22 = arith.constant dense<0.000000e+00> : vector<8x256xf32>
    %39 = tpu.matmul %33, %35, %cst_22 {dimension_numbers = #tpu.dot_dimension_numbers<[1], [0], [0], [1], [0, 0, 1, 1], [], []>} : vector<8x512xf32>, vector<512x256xf32>, vector<8x256xf32> -> vector<8x256xf32>
    %40 = vector.broadcast %36 : vector<1x256xf32> to vector<8x256xf32>
    %41 = arith.addf %39, %40 : vector<8x256xf32>
    %cst_23 = arith.constant dense<0.000000e+00> : vector<8xf32>
    %42 = vector.multi_reduction <add>, %41, %cst_23 [1] : vector<8x256xf32> to vector<8xf32>
    %43 = vector.shape_cast %42 : vector<8xf32> to vector<8x1xf32>
    %cst_24 = arith.constant 2.560000e+02 : f32
    %44 = vector.broadcast %cst_24 : f32 to vector<8x1xf32>
    %45 = arith.divf %43, %44 : vector<8x1xf32>
    %46 = vector.broadcast %45 : vector<8x1xf32> to vector<8x256xf32>
    %47 = arith.subf %41, %46 : vector<8x256xf32>
    %48 = arith.mulf %47, %47 : vector<8x256xf32>
    %cst_25 = arith.constant dense<0.000000e+00> : vector<8xf32>
    %49 = vector.multi_reduction <add>, %48, %cst_25 [1] : vector<8x256xf32> to vector<8xf32>
    %50 = vector.shape_cast %49 : vector<8xf32> to vector<8x1xf32>
    %cst_26 = arith.constant 2.560000e+02 : f32
    %51 = vector.broadcast %cst_26 : f32 to vector<8x1xf32>
    %52 = arith.divf %50, %51 : vector<8x1xf32>
    %cst_27 = arith.constant 9.99999974E-6 : f32
    %53 = vector.broadcast %cst_27 : f32 to vector<8x1xf32>
    %54 = arith.addf %52, %53 : vector<8x1xf32>
    %55 = math.rsqrt %54 : vector<8x1xf32>
    %56 = vector.broadcast %55 : vector<8x1xf32> to vector<8x256xf32>
    %57 = arith.mulf %47, %56 : vector<8x256xf32>
    %58 = vector.broadcast %37 : vector<1x256xf32> to vector<8x256xf32>
    %59 = arith.mulf %57, %58 : vector<8x256xf32>
    %60 = vector.broadcast %38 : vector<1x256xf32> to vector<8x256xf32>
    %61 = arith.addf %59, %60 : vector<8x256xf32>
    %cst_28 = arith.constant 0.000000e+00 : f32
    %62 = vector.broadcast %cst_28 : f32 to vector<8x256xf32>
    %63 = arith.cmpf oge, %61, %62 : vector<8x256xf32>
    %cst_29 = arith.constant 2.000000e-02 : f32
    %64 = vector.broadcast %cst_29 : f32 to vector<8x256xf32>
    %65 = arith.mulf %64, %61 : vector<8x256xf32>
    %66 = arith.select %63, %61, %65 : vector<8x256xi1>, vector<8x256xf32>
    %c0_30 = arith.constant 0 : index
    %c0_31 = arith.constant 0 : index
    %67 = vector.load %arg6[%c0_30, %c0_31] : memref<256x128xbf16, #tpu.memory_space<vmem>>, vector<256x128xbf16>
    %68 = arith.extf %67 : vector<256x128xbf16> to vector<256x128xf32>
    %c0_32 = arith.constant 0 : index
    %c0_33 = arith.constant 0 : index
    %69 = vector.load %arg7[%c0_32, %c0_33] : memref<8x128xf32, #tpu.memory_space<vmem>>, vector<1x128xf32>
    %c1_34 = arith.constant 1 : index
    %c0_35 = arith.constant 0 : index
    %70 = vector.load %arg7[%c1_34, %c0_35] : memref<8x128xf32, #tpu.memory_space<vmem>>, vector<1x128xf32>
    %c2_36 = arith.constant 2 : index
    %c0_37 = arith.constant 0 : index
    %71 = vector.load %arg7[%c2_36, %c0_37] : memref<8x128xf32, #tpu.memory_space<vmem>>, vector<1x128xf32>
    %cst_38 = arith.constant dense<0.000000e+00> : vector<8x128xf32>
    %72 = tpu.matmul %66, %68, %cst_38 {dimension_numbers = #tpu.dot_dimension_numbers<[1], [0], [0], [1], [0, 0, 1, 1], [], []>} : vector<8x256xf32>, vector<256x128xf32>, vector<8x128xf32> -> vector<8x128xf32>
    %73 = vector.broadcast %69 : vector<1x128xf32> to vector<8x128xf32>
    %74 = arith.addf %72, %73 : vector<8x128xf32>
    %cst_39 = arith.constant dense<0.000000e+00> : vector<8xf32>
    %75 = vector.multi_reduction <add>, %74, %cst_39 [1] : vector<8x128xf32> to vector<8xf32>
    %76 = vector.shape_cast %75 : vector<8xf32> to vector<8x1xf32>
    %cst_40 = arith.constant 1.280000e+02 : f32
    %77 = vector.broadcast %cst_40 : f32 to vector<8x1xf32>
    %78 = arith.divf %76, %77 : vector<8x1xf32>
    %79 = vector.broadcast %78 : vector<8x1xf32> to vector<8x128xf32>
    %80 = arith.subf %74, %79 : vector<8x128xf32>
    %81 = arith.mulf %80, %80 : vector<8x128xf32>
    %cst_41 = arith.constant dense<0.000000e+00> : vector<8xf32>
    %82 = vector.multi_reduction <add>, %81, %cst_41 [1] : vector<8x128xf32> to vector<8xf32>
    %83 = vector.shape_cast %82 : vector<8xf32> to vector<8x1xf32>
    %cst_42 = arith.constant 1.280000e+02 : f32
    %84 = vector.broadcast %cst_42 : f32 to vector<8x1xf32>
    %85 = arith.divf %83, %84 : vector<8x1xf32>
    %cst_43 = arith.constant 9.99999974E-6 : f32
    %86 = vector.broadcast %cst_43 : f32 to vector<8x1xf32>
    %87 = arith.addf %85, %86 : vector<8x1xf32>
    %88 = math.rsqrt %87 : vector<8x1xf32>
    %89 = vector.broadcast %88 : vector<8x1xf32> to vector<8x128xf32>
    %90 = arith.mulf %80, %89 : vector<8x128xf32>
    %91 = vector.broadcast %70 : vector<1x128xf32> to vector<8x128xf32>
    %92 = arith.mulf %90, %91 : vector<8x128xf32>
    %93 = vector.broadcast %71 : vector<1x128xf32> to vector<8x128xf32>
    %94 = arith.addf %92, %93 : vector<8x128xf32>
    %cst_44 = arith.constant 0.000000e+00 : f32
    %95 = vector.broadcast %cst_44 : f32 to vector<8x128xf32>
    %96 = arith.cmpf oge, %94, %95 : vector<8x128xf32>
    %cst_45 = arith.constant 2.000000e-02 : f32
    %97 = vector.broadcast %cst_45 : f32 to vector<8x128xf32>
    %98 = arith.mulf %97, %94 : vector<8x128xf32>
    %99 = arith.select %96, %94, %98 : vector<8x128xi1>, vector<8x128xf32>
    %c0_46 = arith.constant 0 : index
    %c0_47 = arith.constant 0 : index
    %100 = vector.load %arg8[%c0_46, %c0_47] : memref<128x4xbf16, #tpu.memory_space<vmem>>, vector<128x4xbf16>
    %101 = arith.extf %100 : vector<128x4xbf16> to vector<128x4xf32>
    %cst_48 = arith.constant dense<0.000000e+00> : vector<8x4xf32>
    %102 = tpu.matmul %99, %101, %cst_48 {dimension_numbers = #tpu.dot_dimension_numbers<[1], [0], [0], [1], [0, 0, 1, 1], [], []>} : vector<8x128xf32>, vector<128x4xf32>, vector<8x4xf32> -> vector<8x4xf32>
    %c0_49 = arith.constant 0 : index
    %c0_50 = arith.constant 0 : index
    %103 = vector.load %arg9[%c0_49, %c0_50] : memref<1x4xf32, #tpu.memory_space<vmem>>, vector<1x4xf32>
    %104 = vector.broadcast %103 : vector<1x4xf32> to vector<8x4xf32>
    %105 = arith.addf %102, %104 : vector<8x4xf32>
    %106 = vector.extract_strided_slice %105 {offsets = [0, 0], sizes = [8, 2], strides = [1, 1]} : vector<8x4xf32> to vector<8x2xf32>
    %107 = vector.extract_strided_slice %105 {offsets = [0, 2], sizes = [8, 2], strides = [1, 1]} : vector<8x4xf32> to vector<8x2xf32>
    %cst_51 = arith.constant 5.000000e-01 : f32
    %108 = vector.broadcast %cst_51 : f32 to vector<8x2xf32>
    %109 = arith.mulf %108, %107 : vector<8x2xf32>
    %110 = math.exp %109 : vector<8x2xf32>
    %c0_52 = arith.constant 0 : index
    %c0_53 = arith.constant 0 : index
    %111 = vector.load %arg1[%c0_52, %c0_53] : memref<8x2xf32, #tpu.memory_space<vmem>>, vector<8x2xf32>
    %112 = arith.mulf %110, %111 : vector<8x2xf32>
    %113 = arith.addf %106, %112 : vector<8x2xf32>
    %c0_54 = arith.constant 0 : index
    %c0_55 = arith.constant 0 : index
    %114 = vector.load %arg10[%c0_54, %c0_55] : memref<2x128xbf16, #tpu.memory_space<vmem>>, vector<2x128xbf16>
    %115 = arith.extf %114 : vector<2x128xbf16> to vector<2x128xf32>
    %c0_56 = arith.constant 0 : index
    %c0_57 = arith.constant 0 : index
    %116 = vector.load %arg11[%c0_56, %c0_57] : memref<8x128xf32, #tpu.memory_space<vmem>>, vector<1x128xf32>
    %c1_58 = arith.constant 1 : index
    %c0_59 = arith.constant 0 : index
    %117 = vector.load %arg11[%c1_58, %c0_59] : memref<8x128xf32, #tpu.memory_space<vmem>>, vector<1x128xf32>
    %c2_60 = arith.constant 2 : index
    %c0_61 = arith.constant 0 : index
    %118 = vector.load %arg11[%c2_60, %c0_61] : memref<8x128xf32, #tpu.memory_space<vmem>>, vector<1x128xf32>
    %cst_62 = arith.constant dense<0.000000e+00> : vector<8x128xf32>
    %119 = tpu.matmul %113, %115, %cst_62 {dimension_numbers = #tpu.dot_dimension_numbers<[1], [0], [0], [1], [0, 0, 1, 1], [], []>} : vector<8x2xf32>, vector<2x128xf32>, vector<8x128xf32> -> vector<8x128xf32>
    %120 = vector.broadcast %116 : vector<1x128xf32> to vector<8x128xf32>
    %121 = arith.addf %119, %120 : vector<8x128xf32>
    %cst_63 = arith.constant dense<0.000000e+00> : vector<8xf32>
    %122 = vector.multi_reduction <add>, %121, %cst_63 [1] : vector<8x128xf32> to vector<8xf32>
    %123 = vector.shape_cast %122 : vector<8xf32> to vector<8x1xf32>
    %cst_64 = arith.constant 1.280000e+02 : f32
    %124 = vector.broadcast %cst_64 : f32 to vector<8x1xf32>
    %125 = arith.divf %123, %124 : vector<8x1xf32>
    %126 = vector.broadcast %125 : vector<8x1xf32> to vector<8x128xf32>
    %127 = arith.subf %121, %126 : vector<8x128xf32>
    %128 = arith.mulf %127, %127 : vector<8x128xf32>
    %cst_65 = arith.constant dense<0.000000e+00> : vector<8xf32>
    %129 = vector.multi_reduction <add>, %128, %cst_65 [1] : vector<8x128xf32> to vector<8xf32>
    %130 = vector.shape_cast %129 : vector<8xf32> to vector<8x1xf32>
    %cst_66 = arith.constant 1.280000e+02 : f32
    %131 = vector.broadcast %cst_66 : f32 to vector<8x1xf32>
    %132 = arith.divf %130, %131 : vector<8x1xf32>
    %cst_67 = arith.constant 9.99999974E-6 : f32
    %133 = vector.broadcast %cst_67 : f32 to vector<8x1xf32>
    %134 = arith.addf %132, %133 : vector<8x1xf32>
    %135 = math.rsqrt %134 : vector<8x1xf32>
    %136 = vector.broadcast %135 : vector<8x1xf32> to vector<8x128xf32>
    %137 = arith.mulf %127, %136 : vector<8x128xf32>
    %138 = vector.broadcast %117 : vector<1x128xf32> to vector<8x128xf32>
    %139 = arith.mulf %137, %138 : vector<8x128xf32>
    %140 = vector.broadcast %118 : vector<1x128xf32> to vector<8x128xf32>
    %141 = arith.addf %139, %140 : vector<8x128xf32>
    %cst_68 = arith.constant 0.000000e+00 : f32
    %142 = vector.broadcast %cst_68 : f32 to vector<8x128xf32>
    %143 = arith.cmpf oge, %141, %142 : vector<8x128xf32>
    %cst_69 = arith.constant 2.000000e-02 : f32
    %144 = vector.broadcast %cst_69 : f32 to vector<8x128xf32>
    %145 = arith.mulf %144, %141 : vector<8x128xf32>
    %146 = arith.select %143, %141, %145 : vector<8x128xi1>, vector<8x128xf32>
    %c0_70 = arith.constant 0 : index
    %c0_71 = arith.constant 0 : index
    %147 = vector.load %arg12[%c0_70, %c0_71] : memref<128x256xbf16, #tpu.memory_space<vmem>>, vector<128x256xbf16>
    %148 = arith.extf %147 : vector<128x256xbf16> to vector<128x256xf32>
    %c0_72 = arith.constant 0 : index
    %c0_73 = arith.constant 0 : index
    %149 = vector.load %arg13[%c0_72, %c0_73] : memref<8x256xf32, #tpu.memory_space<vmem>>, vector<1x256xf32>
    %c1_74 = arith.constant 1 : index
    %c0_75 = arith.constant 0 : index
    %150 = vector.load %arg13[%c1_74, %c0_75] : memref<8x256xf32, #tpu.memory_space<vmem>>, vector<1x256xf32>
    %c2_76 = arith.constant 2 : index
    %c0_77 = arith.constant 0 : index
    %151 = vector.load %arg13[%c2_76, %c0_77] : memref<8x256xf32, #tpu.memory_space<vmem>>, vector<1x256xf32>
    %cst_78 = arith.constant dense<0.000000e+00> : vector<8x256xf32>
    %152 = tpu.matmul %146, %148, %cst_78 {dimension_numbers = #tpu.dot_dimension_numbers<[1], [0], [0], [1], [0, 0, 1, 1], [], []>} : vector<8x128xf32>, vector<128x256xf32>, vector<8x256xf32> -> vector<8x256xf32>
    %153 = vector.broadcast %149 : vector<1x256xf32> to vector<8x256xf32>
    %154 = arith.addf %152, %153 : vector<8x256xf32>
    %cst_79 = arith.constant dense<0.000000e+00> : vector<8xf32>
    %155 = vector.multi_reduction <add>, %154, %cst_79 [1] : vector<8x256xf32> to vector<8xf32>
    %156 = vector.shape_cast %155 : vector<8xf32> to vector<8x1xf32>
    %cst_80 = arith.constant 2.560000e+02 : f32
    %157 = vector.broadcast %cst_80 : f32 to vector<8x1xf32>
    %158 = arith.divf %156, %157 : vector<8x1xf32>
    %159 = vector.broadcast %158 : vector<8x1xf32> to vector<8x256xf32>
    %160 = arith.subf %154, %159 : vector<8x256xf32>
    %161 = arith.mulf %160, %160 : vector<8x256xf32>
    %cst_81 = arith.constant dense<0.000000e+00> : vector<8xf32>
    %162 = vector.multi_reduction <add>, %161, %cst_81 [1] : vector<8x256xf32> to vector<8xf32>
    %163 = vector.shape_cast %162 : vector<8xf32> to vector<8x1xf32>
    %cst_82 = arith.constant 2.560000e+02 : f32
    %164 = vector.broadcast %cst_82 : f32 to vector<8x1xf32>
    %165 = arith.divf %163, %164 : vector<8x1xf32>
    %cst_83 = arith.constant 9.99999974E-6 : f32
    %166 = vector.broadcast %cst_83 : f32 to vector<8x1xf32>
    %167 = arith.addf %165, %166 : vector<8x1xf32>
    %168 = math.rsqrt %167 : vector<8x1xf32>
    %169 = vector.broadcast %168 : vector<8x1xf32> to vector<8x256xf32>
    %170 = arith.mulf %160, %169 : vector<8x256xf32>
    %171 = vector.broadcast %150 : vector<1x256xf32> to vector<8x256xf32>
    %172 = arith.mulf %170, %171 : vector<8x256xf32>
    %173 = vector.broadcast %151 : vector<1x256xf32> to vector<8x256xf32>
    %174 = arith.addf %172, %173 : vector<8x256xf32>
    %cst_84 = arith.constant 0.000000e+00 : f32
    %175 = vector.broadcast %cst_84 : f32 to vector<8x256xf32>
    %176 = arith.cmpf oge, %174, %175 : vector<8x256xf32>
    %cst_85 = arith.constant 2.000000e-02 : f32
    %177 = vector.broadcast %cst_85 : f32 to vector<8x256xf32>
    %178 = arith.mulf %177, %174 : vector<8x256xf32>
    %179 = arith.select %176, %174, %178 : vector<8x256xi1>, vector<8x256xf32>
    %c0_86 = arith.constant 0 : index
    %c0_87 = arith.constant 0 : index
    %180 = vector.load %arg14[%c0_86, %c0_87] : memref<256x512xbf16, #tpu.memory_space<vmem>>, vector<256x512xbf16>
    %181 = arith.extf %180 : vector<256x512xbf16> to vector<256x512xf32>
    %c0_88 = arith.constant 0 : index
    %c0_89 = arith.constant 0 : index
    %182 = vector.load %arg15[%c0_88, %c0_89] : memref<8x512xf32, #tpu.memory_space<vmem>>, vector<1x512xf32>
    %c1_90 = arith.constant 1 : index
    %c0_91 = arith.constant 0 : index
    %183 = vector.load %arg15[%c1_90, %c0_91] : memref<8x512xf32, #tpu.memory_space<vmem>>, vector<1x512xf32>
    %c2_92 = arith.constant 2 : index
    %c0_93 = arith.constant 0 : index
    %184 = vector.load %arg15[%c2_92, %c0_93] : memref<8x512xf32, #tpu.memory_space<vmem>>, vector<1x512xf32>
    %cst_94 = arith.constant dense<0.000000e+00> : vector<8x512xf32>
    %185 = tpu.matmul %179, %181, %cst_94 {dimension_numbers = #tpu.dot_dimension_numbers<[1], [0], [0], [1], [0, 0, 1, 1], [], []>} : vector<8x256xf32>, vector<256x512xf32>, vector<8x512xf32> -> vector<8x512xf32>
    %186 = vector.broadcast %182 : vector<1x512xf32> to vector<8x512xf32>
    %187 = arith.addf %185, %186 : vector<8x512xf32>
    %cst_95 = arith.constant dense<0.000000e+00> : vector<8xf32>
    %188 = vector.multi_reduction <add>, %187, %cst_95 [1] : vector<8x512xf32> to vector<8xf32>
    %189 = vector.shape_cast %188 : vector<8xf32> to vector<8x1xf32>
    %cst_96 = arith.constant 5.120000e+02 : f32
    %190 = vector.broadcast %cst_96 : f32 to vector<8x1xf32>
    %191 = arith.divf %189, %190 : vector<8x1xf32>
    %192 = vector.broadcast %191 : vector<8x1xf32> to vector<8x512xf32>
    %193 = arith.subf %187, %192 : vector<8x512xf32>
    %194 = arith.mulf %193, %193 : vector<8x512xf32>
    %cst_97 = arith.constant dense<0.000000e+00> : vector<8xf32>
    %195 = vector.multi_reduction <add>, %194, %cst_97 [1] : vector<8x512xf32> to vector<8xf32>
    %196 = vector.shape_cast %195 : vector<8xf32> to vector<8x1xf32>
    %cst_98 = arith.constant 5.120000e+02 : f32
    %197 = vector.broadcast %cst_98 : f32 to vector<8x1xf32>
    %198 = arith.divf %196, %197 : vector<8x1xf32>
    %cst_99 = arith.constant 9.99999974E-6 : f32
    %199 = vector.broadcast %cst_99 : f32 to vector<8x1xf32>
    %200 = arith.addf %198, %199 : vector<8x1xf32>
    %201 = math.rsqrt %200 : vector<8x1xf32>
    %202 = vector.broadcast %201 : vector<8x1xf32> to vector<8x512xf32>
    %203 = arith.mulf %193, %202 : vector<8x512xf32>
    %204 = vector.broadcast %183 : vector<1x512xf32> to vector<8x512xf32>
    %205 = arith.mulf %203, %204 : vector<8x512xf32>
    %206 = vector.broadcast %184 : vector<1x512xf32> to vector<8x512xf32>
    %207 = arith.addf %205, %206 : vector<8x512xf32>
    %cst_100 = arith.constant 0.000000e+00 : f32
    %208 = vector.broadcast %cst_100 : f32 to vector<8x512xf32>
    %209 = arith.cmpf oge, %207, %208 : vector<8x512xf32>
    %cst_101 = arith.constant 2.000000e-02 : f32
    %210 = vector.broadcast %cst_101 : f32 to vector<8x512xf32>
    %211 = arith.mulf %210, %207 : vector<8x512xf32>
    %212 = arith.select %209, %207, %211 : vector<8x512xi1>, vector<8x512xf32>
    %c0_102 = arith.constant 0 : index
    %c0_103 = arith.constant 0 : index
    %213 = vector.load %arg16[%c0_102, %c0_103] : memref<512x32xbf16, #tpu.memory_space<vmem>>, vector<512x32xbf16>
    %214 = arith.extf %213 : vector<512x32xbf16> to vector<512x32xf32>
    %cst_104 = arith.constant dense<0.000000e+00> : vector<8x32xf32>
    %215 = tpu.matmul %212, %214, %cst_104 {dimension_numbers = #tpu.dot_dimension_numbers<[1], [0], [0], [1], [0, 0, 1, 1], [], []>} : vector<8x512xf32>, vector<512x32xf32>, vector<8x32xf32> -> vector<8x32xf32>
    %c0_105 = arith.constant 0 : index
    %c0_106 = arith.constant 0 : index
    %216 = vector.load %arg17[%c0_105, %c0_106] : memref<1x32xf32, #tpu.memory_space<vmem>>, vector<1x32xf32>
    %217 = vector.broadcast %216 : vector<1x32xf32> to vector<8x32xf32>
    %218 = arith.addf %215, %217 : vector<8x32xf32>
    %cst_107 = arith.constant dense<0xFF800000> : vector<8xf32>
    %219 = vector.multi_reduction <maximumf>, %218, %cst_107 [1] : vector<8x32xf32> to vector<8xf32>
    %220 = vector.shape_cast %219 : vector<8xf32> to vector<8x1xf32>
    %221 = vector.broadcast %220 : vector<8x1xf32> to vector<8x32xf32>
    %222 = arith.subf %218, %221 : vector<8x32xf32>
    %223 = math.exp %222 : vector<8x32xf32>
    %cst_108 = arith.constant dense<0.000000e+00> : vector<8xf32>
    %224 = vector.multi_reduction <add>, %223, %cst_108 [1] : vector<8x32xf32> to vector<8xf32>
    %225 = vector.shape_cast %224 : vector<8xf32> to vector<8x1xf32>
    %226 = vector.broadcast %225 : vector<8x1xf32> to vector<8x32xf32>
    %227 = arith.divf %223, %226 : vector<8x32xf32>
    %cst_109 = arith.constant 0.000000e+00 : f32
    %228 = vector.broadcast %cst_109 : f32 to vector<8x2xf32>
    %229 = tpu.concatenate %106, %107, %113, %228 in 1 : vector<8x2xf32>, vector<8x2xf32>, vector<8x2xf32>, vector<8x2xf32> -> vector<8x8xf32>
    %c0_110 = arith.constant 0 : index
    %c0_111 = arith.constant 0 : index
    %230 = vector.load %arg18[%c0_110, %c0_111] : memref<8x8xf32, #tpu.memory_space<vmem>>, vector<8x8xf32>
    tpu.vector_store %arg18[%c0_110, %c0_111], %229 {strides = array<i32>} : memref<8x8xf32, #tpu.memory_space<vmem>>, vector<8x8xf32>,
    %c0_112 = arith.constant 0 : index
    %c0_113 = arith.constant 0 : index
    %231 = vector.load %arg19[%c0_112, %c0_113] : memref<8x32xf32, #tpu.memory_space<vmem>>, vector<8x32xf32>
    tpu.vector_store %arg19[%c0_112, %c0_113], %227 {strides = array<i32>} : memref<8x32xf32, #tpu.memory_space<vmem>>, vector<8x32xf32>,
    return
  }
}

</mosaic_0001>

<llo_original>
// kernel: vae_forward.1
$region0: #{vae_forward.1}
  #allocation0 [shape = 'u32[]', space=smem, size = 0x4, offset = 0x4, fixed_abs, tag = 'smem constant byte address 0x4 - core index']
  #allocation1 [shape = 'u32[144,128]{1,0:T(1,128)}', space=vmem, size = 0x12000, scoped, tag = 'internal scratch']
  %s0 = inlined_call_operand.vmem [shape: f32[8,32], index: 0, kind: input, shape index: {}]
  %s1 = inlined_call_operand.vmem [shape: f32[8,2], index: 1, kind: input, shape index: {}]
  %s2 = inlined_call_operand.vmem [shape: bf16[32,512], index: 2, kind: input, shape index: {}]
  %s3 = inlined_call_operand.vmem [shape: f32[8,512], index: 3, kind: input, shape index: {}]
  %s4 = inlined_call_operand.hbm [shape: bf16[512,256], index: 4, kind: input, shape index: {}]
  %s5 = inlined_call_operand.hbm [shape: f32[8,256], index: 5, kind: input, shape index: {}]
  %s6 = inlined_call_operand.vmem [shape: bf16[256,128], index: 6, kind: input, shape index: {}]
  %s7 = inlined_call_operand.hbm [shape: f32[8,128], index: 7, kind: input, shape index: {}]
  %s8 = inlined_call_operand.vmem [shape: bf16[128,4], index: 8, kind: input, shape index: {}]
  %s9 = inlined_call_operand.hbm [shape: f32[1,4], index: 9, kind: input, shape index: {}]
  %s10 = inlined_call_operand.hbm [shape: bf16[2,128], index: 10, kind: input, shape index: {}]
  %s11 = inlined_call_operand.hbm [shape: f32[8,128], index: 11, kind: input, shape index: {}]
  %s12 = inlined_call_operand.vmem [shape: bf16[128,256], index: 12, kind: input, shape index: {}]
  %s13 = inlined_call_operand.hbm [shape: f32[8,256], index: 13, kind: input, shape index: {}]
  %s14 = inlined_call_operand.hbm [shape: bf16[256,512], index: 14, kind: input, shape index: {}]
  %s15 = inlined_call_operand.vmem [shape: f32[8,512], index: 15, kind: input, shape index: {}]
  %s16 = inlined_call_operand.vmem [shape: bf16[512,32], index: 16, kind: input, shape index: {}]
  %s17 = inlined_call_operand.hbm [shape: f32[1,32], index: 17, kind: input, shape index: {}]
  %s18 = inlined_call_operand.vmem [shape: f32[8,8], index: 18, kind: output, shape index: {0}]
  %s19 = inlined_call_operand.hbm [shape: f32[8,32], index: 19, kind: output, shape index: {1}]
  %20 = xla_tuple %s18, %s19
  %s21 = sld [smem:[#allocation0]]
  $region126: #{vae_forward.1} parent=0
    _
  %s23 = ssub.s32 1, %s21
  %s24 = scalar_select 0, %s23, %s21
  $region1: #{vae_forward.1} parent=0
    #allocation2 [shape = 'u8[262144]{0}', space=vmem, size = 0x40000, scoped, tag = 'input window, operand 4, single buffered']
    #allocation3 [shape = 's32[1]{0}', space=sflag, size = 0x4, scoped, tag = 'scoped memory for vae_forward.1']
    #allocation4 [shape = 's32[1]{0}', space=sflag, size = 0x4, scoped, tag = 'scoped memory for vae_forward.1']
    #allocation5 [shape = 'u8[8192]{0}', space=vmem, size = 0x2000, scoped, tag = 'input window, operand 5, single buffered']
    #allocation6 [shape = 's32[1]{0}', space=sflag, size = 0x4, scoped, tag = 'scoped memory for vae_forward.1']
    #allocation7 [shape = 'u8[4096]{0}', space=vmem, size = 0x1000, scoped, tag = 'input window, operand 7, single buffered']
    #allocation8 [shape = 'u8[512]{0}', space=vmem, size = 0x400, scoped, tag = 'input window, operand 9, single buffered']
    #allocation9 [shape = 's32[1]{0}', space=sflag, size = 0x4, scoped, tag = 'scoped memory for vae_forward.1']
    #allocation10 [shape = 'u8[512]{0}', space=vmem, size = 0x400, scoped, tag = 'input window, operand 10, single buffered']
    #allocation11 [shape = 'u8[4096]{0}', space=vmem, size = 0x1000, scoped, tag = 'input window, operand 11, single buffered']
    #allocation12 [shape = 's32[1]{0}', space=sflag, size = 0x4, scoped, tag = 'scoped memory for vae_forward.1']
    #allocation13 [shape = 'u8[8192]{0}', space=vmem, size = 0x2000, scoped, tag = 'input window, operand 13, single buffered']
    #allocation14 [shape = 'u8[262144]{0}', space=vmem, size = 0x40000, scoped, tag = 'input window, operand 14, single buffered']
    #allocation15 [shape = 's32[1]{0}', space=sflag, size = 0x4, scoped, tag = 'scoped memory for vae_forward.1']
    #allocation16 [shape = 'u8[512]{0}', space=vmem, size = 0x400, scoped, tag = 'input window, operand 17, single buffered']
    #allocation17 [shape = 'u8[4096]{0}', space=vmem, size = 0x1000, scoped, tag = 'output window, operand 1, single buffered']
    %25 = vsyncpa [#allocation3], 0
    %26 = vsyncpa [#allocation6], 0
    %27 = vsyncpa [#allocation9], 0
    %28 = vsyncpa [#allocation12], 0
    %29 = vsyncpa [#allocation15], 0
    %30 = vsyncpa [#allocation4], 0
    // Predicated region
    $region2: #{vae_forward.1} parent=1 // pred_check
      _
    $region3: #{vae_forward.1} parent=1 // pred_check_branch
      %32 = sbr.rel (0) target = $region5
    $region4: #{vae_forward.1} parent=1 // pred_region
      _
    $region5: #{vae_forward.1} parent=1 // pred_fallthru
      _
    // Predicated region
    $region6: #{vae_forward.1} parent=1 // pred_check
      _
    $region7: #{vae_forward.1} parent=1 // pred_check_branch
      %34 = sbr.rel (0) target = $region9
    $region8: #{vae_forward.1} parent=1 // pred_region
      _
    $region9: #{vae_forward.1} parent=1 // pred_fallthru
      _
    // Predicated region
    $region10: #{vae_forward.1} parent=1 // pred_check
      _
    $region11: #{vae_forward.1} parent=1 // pred_check_branch
      %36 = sbr.rel (0) target = $region13
    $region12: #{vae_forward.1} parent=1 // pred_region
      _
    $region13: #{vae_forward.1} parent=1 // pred_fallthru
      _
    // Predicated region
    $region14: #{vae_forward.1} parent=1 // pred_check
      _
    $region15: #{vae_forward.1} parent=1 // pred_check_branch
      %38 = sbr.rel (0) target = $region17
    $region16: #{vae_forward.1} parent=1 // pred_region
      _
    $region17: #{vae_forward.1} parent=1 // pred_fallthru
      _
    // Predicated region
    $region18: #{vae_forward.1} parent=1 // pred_check
      _
    $region19: #{vae_forward.1} parent=1 // pred_check_branch
      %40 = sbr.rel (0) target = $region21
    $region20: #{vae_forward.1} parent=1 // pred_region
      %s42 = ssub.s32 8192, 8192
      %43 = vsyncadd [#allocation3], %s42
      %s44 = sshll.u32 [#allocation2], 4
      %s45 = int_to_ptr.vmem [resolvable:$true] %s44
      %50 = dma.hbm_to_vmem [thread:$0]  %s4, 8192, %s45, [#allocation3], 128, 128, 8
    $region21: #{vae_forward.1} parent=1 // pred_fallthru
      _
    // Predicated region
    $region22: #{vae_forward.1} parent=1 // pred_check
      _
    $region23: #{vae_forward.1} parent=1 // pred_check_branch
      %52 = sbr.rel (0) target = $region25
    $region24: #{vae_forward.1} parent=1 // pred_region
      %s54 = ssub.s32 256, 256
      %55 = vsyncadd [#allocation6], %s54
      %s57 = sshll.u32 [#allocation5], 4
      %s58 = int_to_ptr.vmem [resolvable:$true] %s57
      %60 = dma.hbm_to_vmem [thread:$0]  %s5, 256, %s58, [#allocation6]
    $region25: #{vae_forward.1} parent=1 // pred_fallthru
      _
    // Predicated region
    $region26: #{vae_forward.1} parent=1 // pred_check
      _
    $region27: #{vae_forward.1} parent=1 // pred_check_branch
      %62 = sbr.rel (0) target = $region29
    $region28: #{vae_forward.1} parent=1 // pred_region
      _
    $region29: #{vae_forward.1} parent=1 // pred_fallthru
      _
    // Predicated region
    $region30: #{vae_forward.1} parent=1 // pred_check
      _
    $region31: #{vae_forward.1} parent=1 // pred_check_branch
      %64 = sbr.rel (0) target = $region33
    $region32: #{vae_forward.1} parent=1 // pred_region
      %s66 = ssub.s32 128, 128
      %67 = vsyncadd [#allocation6], %s66
      %s69 = sshll.u32 [#allocation7], 4
      %s70 = int_to_ptr.vmem [resolvable:$true] %s69
      %72 = dma.hbm_to_vmem [thread:$0]  %s7, 128, %s70, [#allocation6]
    $region33: #{vae_forward.1} parent=1 // pred_fallthru
      _
    // Predicated region
    $region34: #{vae_forward.1} parent=1 // pred_check
      _
    $region35: #{vae_forward.1} parent=1 // pred_check_branch
      %74 = sbr.rel (0) target = $region37
    $region36: #{vae_forward.1} parent=1 // pred_region
      _
    $region37: #{vae_forward.1} parent=1 // pred_fallthru
      _
    // Predicated region
    $region38: #{vae_forward.1} parent=1 // pred_check
      _
    $region39: #{vae_forward.1} parent=1 // pred_check_branch
      %76 = sbr.rel (0) target = $region41
    $region40: #{vae_forward.1} parent=1 // pred_region
      %s78 = ssub.s32 16, 16
      %79 = vsyncadd [#allocation9], %s78
      %s81 = sshll.u32 [#allocation8], 4
      %s82 = int_to_ptr.vmem [resolvable:$true] %s81
      %84 = dma.hbm_to_vmem [thread:$0]  %s9, 16, %s82, [#allocation9]
    $region41: #{vae_forward.1} parent=1 // pred_fallthru
      _
    // Predicated region
    $region42: #{vae_forward.1} parent=1 // pred_check
      _
    $region43: #{vae_forward.1} parent=1 // pred_check_branch
      %86 = sbr.rel (0) target = $region45
    $region44: #{vae_forward.1} parent=1 // pred_region
      %s88 = ssub.s32 16, 16
      %89 = vsyncadd [#allocation9], %s88
      %s91 = sshll.u32 [#allocation10], 4
      %s92 = int_to_ptr.vmem [resolvable:$true] %s91
      %94 = dma.hbm_to_vmem [thread:$0]  %s10, 16, %s92, [#allocation9]
    $region45: #{vae_forward.1} parent=1 // pred_fallthru
      _
    // Predicated region
    $region46: #{vae_forward.1} parent=1 // pred_check
      _
    $region47: #{vae_forward.1} parent=1 // pred_check_branch
      %96 = sbr.rel (0) target = $region49
    $region48: #{vae_forward.1} parent=1 // pred_region
      %s98 = ssub.s32 128, 128
      %99 = vsyncadd [#allocation12], %s98
      %s101 = sshll.u32 [#allocation11], 4
      %s102 = int_to_ptr.vmem [resolvable:$true] %s101
      %104 = dma.hbm_to_vmem [thread:$0]  %s11, 128, %s102, [#allocation12]
    $region49: #{vae_forward.1} parent=1 // pred_fallthru
      _
    // Predicated region
    $region50: #{vae_forward.1} parent=1 // pred_check
      _
    $region51: #{vae_forward.1} parent=1 // pred_check_branch
      %106 = sbr.rel (0) target = $region53
    $region52: #{vae_forward.1} parent=1 // pred_region
      _
    $region53: #{vae_forward.1} parent=1 // pred_fallthru
      _
    // Predicated region
    $region54: #{vae_forward.1} parent=1 // pred_check
      _
    $region55: #{vae_forward.1} parent=1 // pred_check_branch
      %108 = sbr.rel (0) target = $region57
    $region56: #{vae_forward.1} parent=1 // pred_region
      %s110 = ssub.s32 256, 256
      %111 = vsyncadd [#allocation12], %s110
      %s113 = sshll.u32 [#allocation13], 4
      %s114 = int_to_ptr.vmem [resolvable:$true] %s113
      %116 = dma.hbm_to_vmem [thread:$0]  %s13, 256, %s114, [#allocation12]
    $region57: #{vae_forward.1} parent=1 // pred_fallthru
      _
    // Predicated region
    $region58: #{vae_forward.1} parent=1 // pred_check
      _
    $region59: #{vae_forward.1} parent=1 // pred_check_branch
      %118 = sbr.rel (0) target = $region61
    $region60: #{vae_forward.1} parent=1 // pred_region
      %s120 = ssub.s32 8192, 8192
      %121 = vsyncadd [#allocation15], %s120
      %s122 = sshll.u32 [#allocation14], 4
      %s123 = int_to_ptr.vmem [resolvable:$true] %s122
      %128 = dma.hbm_to_vmem [thread:$0]  %s14, 8192, %s123, [#allocation15], 256, 256, 16
    $region61: #{vae_forward.1} parent=1 // pred_fallthru
      _
    // Predicated region
    $region62: #{vae_forward.1} parent=1 // pred_check
      _
    $region63: #{vae_forward.1} parent=1 // pred_check_branch
      %130 = sbr.rel (0) target = $region65
    $region64: #{vae_forward.1} parent=1 // pred_region
      _
    $region65: #{vae_forward.1} parent=1 // pred_fallthru
      _
    // Predicated region
    $region66: #{vae_forward.1} parent=1 // pred_check
      _
    $region67: #{vae_forward.1} parent=1 // pred_check_branch
      %132 = sbr.rel (0) target = $region69
    $region68: #{vae_forward.1} parent=1 // pred_region
      _
    $region69: #{vae_forward.1} parent=1 // pred_fallthru
      _
    // Predicated region
    $region70: #{vae_forward.1} parent=1 // pred_check
      _
    $region71: #{vae_forward.1} parent=1 // pred_check_branch
      %134 = sbr.rel (0) target = $region73
    $region72: #{vae_forward.1} parent=1 // pred_region
      %s136 = ssub.s32 16, 16
      %137 = vsyncadd [#allocation15], %s136
      %s139 = sshll.u32 [#allocation16], 4
      %s140 = int_to_ptr.vmem [resolvable:$true] %s139
      %142 = dma.hbm_to_vmem [thread:$0]  %s17, 16, %s140, [#allocation15]
    $region73: #{vae_forward.1} parent=1 // pred_fallthru
      _
    // Predicated region
    $region74: #{vae_forward.1} parent=1 // pred_check
      _
    $region75: #{vae_forward.1} parent=1 // pred_check_branch
      %144 = sbr.rel (0) target = $region77
    $region76: #{vae_forward.1} parent=1 // pred_region
      %145 = dma.done [#allocation3], 8192
    $region77: #{vae_forward.1} parent=1 // pred_fallthru
      _
    // Predicated region
    $region78: #{vae_forward.1} parent=1 // pred_check
      _
    $region79: #{vae_forward.1} parent=1 // pred_check_branch
      %147 = sbr.rel (0) target = $region81
    $region80: #{vae_forward.1} parent=1 // pred_region
      %148 = dma.done [#allocation6], 256
    $region81: #{vae_forward.1} parent=1 // pred_fallthru
      _
    // Predicated region
    $region82: #{vae_forward.1} parent=1 // pred_check
      _
    $region83: #{vae_forward.1} parent=1 // pred_check_branch
      %150 = sbr.rel (0) target = $region85
    $region84: #{vae_forward.1} parent=1 // pred_region
      %151 = dma.done [#allocation6], 128
    $region85: #{vae_forward.1} parent=1 // pred_fallthru
      _
    // Predicated region
    $region86: #{vae_forward.1} parent=1 // pred_check
      _
    $region87: #{vae_forward.1} parent=1 // pred_check_branch
      %153 = sbr.rel (0) target = $region89
    $region88: #{vae_forward.1} parent=1 // pred_region
      %154 = dma.done [#allocation9], 16
    $region89: #{vae_forward.1} parent=1 // pred_fallthru
      _
    // Predicated region
    $region90: #{vae_forward.1} parent=1 // pred_check
      _
    $region91: #{vae_forward.1} parent=1 // pred_check_branch
      %156 = sbr.rel (0) target = $region93
    $region92: #{vae_forward.1} parent=1 // pred_region
      %157 = dma.done [#allocation9], 16
    $region93: #{vae_forward.1} parent=1 // pred_fallthru
      _
    // Predicated region
    $region94: #{vae_forward.1} parent=1 // pred_check
      _
    $region95: #{vae_forward.1} parent=1 // pred_check_branch
      %159 = sbr.rel (0) target = $region97
    $region96: #{vae_forward.1} parent=1 // pred_region
      %160 = dma.done [#allocation12], 128
    $region97: #{vae_forward.1} parent=1 // pred_fallthru
      _
    // Predicated region
    $region98: #{vae_forward.1} parent=1 // pred_check
      _
    $region99: #{vae_forward.1} parent=1 // pred_check_branch
      %162 = sbr.rel (0) target = $region101
    $region100: #{vae_forward.1} parent=1 // pred_region
      %163 = dma.done [#allocation12], 256
    $region101: #{vae_forward.1} parent=1 // pred_fallthru
      _
    // Predicated region
    $region102: #{vae_forward.1} parent=1 // pred_check
      _
    $region103: #{vae_forward.1} parent=1 // pred_check_branch
      %165 = sbr.rel (0) target = $region105
    $region104: #{vae_forward.1} parent=1 // pred_region
      %166 = dma.done [#allocation15], 8192
    $region105: #{vae_forward.1} parent=1 // pred_fallthru
      _
    // Predicated region
    $region106: #{vae_forward.1} parent=1 // pred_check
      _
    $region107: #{vae_forward.1} parent=1 // pred_check_branch
      %168 = sbr.rel (0) target = $region109
    $region108: #{vae_forward.1} parent=1 // pred_region
      %169 = dma.done [#allocation15], 16
    $region109: #{vae_forward.1} parent=1 // pred_fallthru
      _
    %v170 = vld [vmem:[%s0] sm:$0xff]
    %v171 = vld [vmem:[%s2] sm:$0xff]
    %v172 = vld [vmem:[%s2 + $0x8] sm:$0xff]
    %v173 = vld [vmem:[%s2 + $0x10] sm:$0xff]
    %v174 = vld [vmem:[%s2 + $0x18] sm:$0xff]
    %v175 = vld [vmem:[%s2 + $0x20] sm:$0xff]
    %v176 = vld [vmem:[%s2 + $0x28] sm:$0xff]
    %v177 = vld [vmem:[%s2 + $0x30] sm:$0xff]
    %v178 = vld [vmem:[%s2 + $0x38] sm:$0xff]
    %v179 = vunpack.c.l.bf16 %v171
    %v180 = vunpack.c.h.bf16 %v171
    %v181 = vunpack.c.l.bf16 %v172
    %v182 = vunpack.c.h.bf16 %v172
    %v183 = vunpack.c.l.bf16 %v173
    %v184 = vunpack.c.h.bf16 %v173
    %v185 = vunpack.c.l.bf16 %v174
    %v186 = vunpack.c.h.bf16 %v174
    %v187 = vunpack.c.l.bf16 %v175
    %v188 = vunpack.c.h.bf16 %v175
    %v189 = vunpack.c.l.bf16 %v176
    %v190 = vunpack.c.h.bf16 %v176
    %v191 = vunpack.c.l.bf16 %v177
    %v192 = vunpack.c.h.bf16 %v177
    %v193 = vunpack.c.l.bf16 %v178
    %v194 = vunpack.c.h.bf16 %v178
    %v195 = vld [vmem:[%s3] ss:$8 sm:$0xf]
    %s196 = scalar_lea.vmem %s3, 1
    %v197 = vld [vmem:[%s196] ss:$8 sm:$0xf]
    %s198 = scalar_lea.vmem %s3, 2
    %v199 = vld [vmem:[%s198] ss:$8 sm:$0xf]
    %v201 = vlaneseq
    %v202 = vshrl.u32 %v201, 7
    %v203 = vsub.s32 0, %v202
    %v204 = vrot.slane %v195, %v203
    %v205 = vlaneseq
    %v206 = vshrl.u32 %v205, 7
    %v207 = vsub.s32 1, %v206
    %v208 = vrot.slane %v195, %v207
    %v209 = vlaneseq
    %v210 = vshrl.u32 %v209, 7
    %v211 = vsub.s32 2, %v210
    %v212 = vrot.slane %v195, %v211
    %v213 = vlaneseq
    %v214 = vshrl.u32 %v213, 7
    %v215 = vsub.s32 3, %v214
    %v216 = vrot.slane %v195, %v215
    %vm221 = vcmask 261120
    %v223 = vsel %vm221, %v170, 0
    %225 = vmatprep.subr.mxu0 %v180
    %226 = vmatpush1.msra.mxu0 %v179
    %227 = vmatprep.subr.mxu0 %v184
    %228 = vmatpush1.msra.mxu0 %v183
    %229 = vmatprep.subr.mxu0 %v188
    %230 = vmatpush1.msra.mxu0 %v187
    %231 = vmatprep.subr.mxu0 %v192
    %232 = vmatpush1.msra.mxu0 %v191
    %233 = vmatprep.subr.mxu0 0.0
    %234 = vmatpush1.msra.mxu0 0.0
    %235 = vmatprep.subr.mxu0 0.0
    %236 = vmatpush1.msra.mxu0 0.0
    %237 = vmatprep.subr.mxu0 0.0
    %238 = vmatpush1.msra.mxu0 0.0
    %239 = vmatprep.subr.mxu0 0.0
    %240 = vmatpush1.msra.mxu0 0.0
    %241 = vmatprep.subr.mxu0 0.0
    %242 = vmatpush1.msra.mxu0 0.0
    %243 = vmatprep.subr.mxu0 0.0
    %244 = vmatpush1.msra.mxu0 0.0
    %245 = vmatprep.subr.mxu0 0.0
    %246 = vmatpush1.msra.mxu0 0.0
    %247 = vmatprep.subr.mxu0 0.0
    %248 = vmatpush1.msra.mxu0 0.0
    %249 = vmatprep.subr.mxu0 0.0
    %250 = vmatpush1.msra.mxu0 0.0
    %251 = vmatprep.subr.mxu0 0.0
    %252 = vmatpush1.msra.mxu0 0.0
    %253 = vmatprep.subr.mxu0 0.0
    %254 = vmatpush1.msra.mxu0 0.0
    %255 = vmatprep.subr.mxu0 0.0
    %256 = vmatpush1.msra.mxu0 0.0
    %257 = vmatprep.subr.mxu0 0.0
    %258 = vmatpush1.msra.mxu0 0.0
    %259 = vmatprep.subr.mxu0 0.0
    %260 = vmatpush1.msra.mxu0 0.0
    %261 = vmatprep.subr.mxu0 0.0
    %262 = vmatpush1.msra.mxu0 0.0
    %263 = vmatprep.subr.mxu0 0.0
    %264 = vmatpush1.msra.mxu0 0.0
    %265 = vmatprep.subr.mxu0 0.0
    %266 = vmatpush1.msra.mxu0 0.0
    %267 = vmatprep.subr.mxu0 0.0
    %268 = vmatpush1.msra.mxu0 0.0
    %269 = vmatprep.subr.mxu0 0.0
    %270 = vmatpush1.msra.mxu0 0.0
    %271 = vmatprep.subr.mxu0 0.0
    %272 = vmatpush1.msra.mxu0 0.0
    %273 = vmatprep.subr.mxu0 0.0
    %274 = vmatpush1.msra.mxu0 0.0
    %275 = vmatprep.subr.mxu0 0.0
    %276 = vmatpush1.msra.mxu0 0.0
    %277 = vmatprep.subr.mxu0 0.0
    %278 = vmatpush1.msra.mxu0 0.0
    %279 = vmatprep.subr.mxu0 0.0
    %280 = vmatpush1.msra.mxu0 0.0
    %281 = vmatprep.subr.mxu0 0.0
    %282 = vmatpush1.msra.mxu0 0.0
    %283 = vmatprep.subr.mxu0 0.0
    %284 = vmatpush1.msra.mxu0 0.0
    %285 = vmatprep.subr.mxu0 0.0
    %286 = vmatpush1.msra.mxu0 0.0
    %287 = vmatprep.subr.mxu0 0.0
    %288 = vmatpush1.msra.mxu0 0.0
    %289 = vmatprep.mubr.f32.mxu0 0.0
    %290 = vmatmul.mubr.f32.gmra.mrb[0].mxu0 %v223
    %v291 = vpop.f32.mrb[0].mxu0
    %v292 = vadd.f32 %v204, %v291
    %v293 = vpop.f32.mrb[0].mxu0
    %v294 = vadd.f32 %v208, %v293
    %295 = vdwg.mxu0
    %296 = vmatprep.subr.mxu0 %v182
    %297 = vmatpush1.msra.mxu0 %v181
    %298 = vmatprep.subr.mxu0 %v186
    %299 = vmatpush1.msra.mxu0 %v185
    %300 = vmatprep.subr.mxu0 %v190
    %301 = vmatpush1.msra.mxu0 %v189
    %302 = vmatprep.subr.mxu0 %v194
    %303 = vmatpush1.msra.mxu0 %v193
    %304 = vmatprep.subr.mxu0 0.0
    %305 = vmatpush1.msra.mxu0 0.0
    %306 = vmatprep.subr.mxu0 0.0
    %307 = vmatpush1.msra.mxu0 0.0
    %308 = vmatprep.subr.mxu0 0.0
    %309 = vmatpush1.msra.mxu0 0.0
    %310 = vmatprep.subr.mxu0 0.0
    %311 = vmatpush1.msra.mxu0 0.0
    %312 = vmatprep.subr.mxu0 0.0
    %313 = vmatpush1.msra.mxu0 0.0
    %314 = vmatprep.subr.mxu0 0.0
    %315 = vmatpush1.msra.mxu0 0.0
    %316 = vmatprep.subr.mxu0 0.0
    %317 = vmatpush1.msra.mxu0 0.0
    %318 = vmatprep.subr.mxu0 0.0
    %319 = vmatpush1.msra.mxu0 0.0
    %320 = vmatprep.subr.mxu0 0.0
    %321 = vmatpush1.msra.mxu0 0.0
    %322 = vmatprep.subr.mxu0 0.0
    %323 = vmatpush1.msra.mxu0 0.0
    %324 = vmatprep.subr.mxu0 0.0
    %325 = vmatpush1.msra.mxu0 0.0
    %326 = vmatprep.subr.mxu0 0.0
    %327 = vmatpush1.msra.mxu0 0.0
    %328 = vmatprep.subr.mxu0 0.0
    %329 = vmatpush1.msra.mxu0 0.0
    %330 = vmatprep.subr.mxu0 0.0
    %331 = vmatpush1.msra.mxu0 0.0
    %332 = vmatprep.subr.mxu0 0.0
    %333 = vmatpush1.msra.mxu0 0.0
    %334 = vmatprep.subr.mxu0 0.0
    %335 = vmatpush1.msra.mxu0 0.0
    %336 = vmatprep.subr.mxu0 0.0
    %337 = vmatpush1.msra.mxu0 0.0
    %338 = vmatprep.subr.mxu0 0.0
    %339 = vmatpush1.msra.mxu0 0.0
    %340 = vmatprep.subr.mxu0 0.0
    %341 = vmatpush1.msra.mxu0 0.0
    %342 = vmatprep.subr.mxu0 0.0
    %343 = vmatpush1.msra.mxu0 0.0
    %344 = vmatprep.subr.mxu0 0.0
    %345 = vmatpush1.msra.mxu0 0.0
    %346 = vmatprep.subr.mxu0 0.0
    %347 = vmatpush1.msra.mxu0 0.0
    %348 = vmatprep.subr.mxu0 0.0
    %349 = vmatpush1.msra.mxu0 0.0
    %350 = vmatprep.subr.mxu0 0.0
    %351 = vmatpush1.msra.mxu0 0.0
    %352 = vmatprep.subr.mxu0 0.0
    %353 = vmatpush1.msra.mxu0 0.0
    %354 = vmatprep.subr.mxu0 0.0
    %355 = vmatpush1.msra.mxu0 0.0
    %356 = vmatprep.subr.mxu0 0.0
    %357 = vmatpush1.msra.mxu0 0.0
    %358 = vmatprep.subr.mxu0 0.0
    %359 = vmatpush1.msra.mxu0 0.0
    %360 = vmatprep.mubr.f32.mxu0 0.0
    %361 = vmatmul.mubr.f32.gmra.mrb[0].mxu0 %v223
    %v362 = vpop.f32.mrb[0].mxu0
    %v363 = vadd.f32 %v212, %v362
    %v364 = vpop.f32.mrb[0].mxu0
    %v365 = vadd.f32 %v216, %v364
    %366 = vdwg.mxu0
    %v367 = vadd.f32 %v292, %v294
    %v368 = vadd.f32 %v367, %v363
    %v369 = vadd.f32 %v368, %v365
    %370 = vadd.xlane.f32.xlu0 %v369
    %v371 = vpop.xlane.xlu0 %370
    %v372 = vrcp.pop 512.0
    %v373 = vmul.f32 %v371, %v372
    %v374 = vsub.f32 %v292, %v373
    %v375 = vsub.f32 %v294, %v373
    %v376 = vsub.f32 %v363, %v373
    %v377 = vsub.f32 %v365, %v373
    %v378 = vmul.f32 %v374, %v374
    %v379 = vmul.f32 %v375, %v375
    %v380 = vmul.f32 %v376, %v376
    %v381 = vmul.f32 %v377, %v377
    %v382 = vadd.f32 %v378, %v379
    %v383 = vadd.f32 %v382, %v380
    %v384 = vadd.f32 %v383, %v381
    %385 = vadd.xlane.f32.xlu0 %v384
    %v386 = vpop.xlane.xlu0 %385
    %v387 = vmul.f32 %v386, %v372
    %v388 = vadd.f32 %v387, 1e-05
    %v389 = vrsqrt.pop %v388
    %v390 = vmul.f32 %v374, %v389
    %v391 = vmul.f32 %v375, %v389
    %v392 = vmul.f32 %v376, %v389
    %v393 = vmul.f32 %v377, %v389
    %v395 = vlaneseq
    %v396 = vshrl.u32 %v395, 7
    %v397 = vsub.s32 0, %v396
    %v398 = vrot.slane %v197, %v397
    %v399 = vlaneseq
    %v400 = vshrl.u32 %v399, 7
    %v401 = vsub.s32 1, %v400
    %v402 = vrot.slane %v197, %v401
    %v403 = vlaneseq
    %v404 = vshrl.u32 %v403, 7
    %v405 = vsub.s32 2, %v404
    %v406 = vrot.slane %v197, %v405
    %v407 = vlaneseq
    %v408 = vshrl.u32 %v407, 7
    %v409 = vsub.s32 3, %v408
    %v410 = vrot.slane %v197, %v409
    %v415 = vmul.f32 %v390, %v398
    %v416 = vmul.f32 %v391, %v402
    %v417 = vmul.f32 %v392, %v406
    %v418 = vmul.f32 %v393, %v410
    %v420 = vlaneseq
    %v421 = vshrl.u32 %v420, 7
    %v422 = vsub.s32 0, %v421
    %v423 = vrot.slane %v199, %v422
    %v424 = vlaneseq
    %v425 = vshrl.u32 %v424, 7
    %v426 = vsub.s32 1, %v425
    %v427 = vrot.slane %v199, %v426
    %v428 = vlaneseq
    %v429 = vshrl.u32 %v428, 7
    %v430 = vsub.s32 2, %v429
    %v431 = vrot.slane %v199, %v430
    %v432 = vlaneseq
    %v433 = vshrl.u32 %v432, 7
    %v434 = vsub.s32 3, %v433
    %v435 = vrot.slane %v199, %v434
    %v440 = vadd.f32 %v415, %v423
    %v441 = vadd.f32 %v416, %v427
    %v442 = vadd.f32 %v417, %v431
    %v443 = vadd.f32 %v418, %v435
    %vm444 = vcmp.ge.f32.partialorder %v440, 0.0
    %vm445 = vcmp.ge.f32.partialorder %v441, 0.0
    %vm446 = vcmp.ge.f32.partialorder %v442, 0.0
    %vm447 = vcmp.ge.f32.partialorder %v443, 0.0
    %v448 = vmul.f32 %v440, 0.02
    %v449 = vmul.f32 %v441, 0.02
    %v450 = vmul.f32 %v442, 0.02
    %v451 = vmul.f32 %v443, 0.02
    %v452 = vsel %vm444, %v440, %v448
    %v453 = vsel %vm445, %v441, %v449
    %v454 = vsel %vm446, %v442, %v450
    %v455 = vsel %vm447, %v443, %v451
    %v456 = vld [vmem:[#allocation2] sm:$0xff]
    %v457 = vld [vmem:[#allocation2 + $0x8] sm:$0xff]
    %v458 = vld [vmem:[#allocation2 + $0x10] sm:$0xff]
    %v459 = vld [vmem:[#allocation2 + $0x18] sm:$0xff]
    %v460 = vld [vmem:[#allocation2 + $0x20] sm:$0xff]
    %v461 = vld [vmem:[#allocation2 + $0x28] sm:$0xff]
    %v462 = vld [vmem:[#allocation2 + $0x30] sm:$0xff]
    %v463 = vld [vmem:[#allocation2 + $0x38] sm:$0xff]
    %v464 = vld [vmem:[#allocation2 + $0x40] sm:$0xff]
    %v465 = vld [vmem:[#allocation2 + $0x48] sm:$0xff]
    %v466 = vld [vmem:[#allocation2 + $0x50] sm:$0xff]
    %v467 = vld [vmem:[#allocation2 + $0x58] sm:$0xff]
    %v468 = vld [vmem:[#allocation2 + $0x60] sm:$0xff]
    %v469 = vld [vmem:[#allocation2 + $0x68] sm:$0xff]
    %v470 = vld [vmem:[#allocation2 + $0x70] sm:$0xff]
    %v471 = vld [vmem:[#allocation2 + $0x78] sm:$0xff]
    %v472 = vld [vmem:[#allocation2 + $0x80] sm:$0xff]
    %v473 = vld [vmem:[#allocation2 + $0x88] sm:$0xff]
    %v474 = vld [vmem:[#allocation2 + $0x90] sm:$0xff]
    %v475 = vld [vmem:[#allocation2 + $0x98] sm:$0xff]
    %v476 = vld [vmem:[#allocation2 + $0xa0] sm:$0xff]
    %v477 = vld [vmem:[#allocation2 + $0xa8] sm:$0xff]
    %v478 = vld [vmem:[#allocation2 + $0xb0] sm:$0xff]
    %v479 = vld [vmem:[#allocation2 + $0xb8] sm:$0xff]
    %v480 = vld [vmem:[#allocation2 + $0xc0] sm:$0xff]
    %v481 = vld [vmem:[#allocation2 + $0xc8] sm:$0xff]
    %v482 = vld [vmem:[#allocation2 + $0xd0] sm:$0xff]
    %v483 = vld [vmem:[#allocation2 + $0xd8] sm:$0xff]
    %v484 = vld [vmem:[#allocation2 + $0xe0] sm:$0xff]
    %v485 = vld [vmem:[#allocation2 + $0xe8] sm:$0xff]
    %v486 = vld [vmem:[#allocation2 + $0xf0] sm:$0xff]
    %v487 = vld [vmem:[#allocation2 + $0xf8] sm:$0xff]
    %v488 = vld [vmem:[#allocation2 + $0x100] sm:$0xff]
    %v489 = vld [vmem:[#allocation2 + $0x108] sm:$0xff]
    %v490 = vld [vmem:[#allocation2 + $0x110] sm:$0xff]
    %v491 = vld [vmem:[#allocation2 + $0x118] sm:$0xff]
    %v492 = vld [vmem:[#allocation2 + $0x120] sm:$0xff]
    %v493 = vld [vmem:[#allocation2 + $0x128] sm:$0xff]
    %v494 = vld [vmem:[#allocation2 + $0x130] sm:$0xff]
    %v495 = vld [vmem:[#allocation2 + $0x138] sm:$0xff]
    %v496 = vld [vmem:[#allocation2 + $0x140] sm:$0xff]
    %v497 = vld [vmem:[#allocation2 + $0x148] sm:$0xff]
    %v498 = vld [vmem:[#allocation2 + $0x150] sm:$0xff]
    %v499 = vld [vmem:[#allocation2 + $0x158] sm:$0xff]
    %v500 = vld [vmem:[#allocation2 + $0x160] sm:$0xff]
    %v501 = vld [vmem:[#allocation2 + $0x168] sm:$0xff]
    %v502 = vld [vmem:[#allocation2 + $0x170] sm:$0xff]
    %v503 = vld [vmem:[#allocation2 + $0x178] sm:$0xff]
    %v504 = vld [vmem:[#allocation2 + $0x180] sm:$0xff]
    %v505 = vld [vmem:[#allocation2 + $0x188] sm:$0xff]
    %v506 = vld [vmem:[#allocation2 + $0x190] sm:$0xff]
    %v507 = vld [vmem:[#allocation2 + $0x198] sm:$0xff]
    %v508 = vld [vmem:[#allocation2 + $0x1a0] sm:$0xff]
    %v509 = vld [vmem:[#allocation2 + $0x1a8] sm:$0xff]
    %v510 = vld [vmem:[#allocation2 + $0x1b0] sm:$0xff]
    %v511 = vld [vmem:[#allocation2 + $0x1b8] sm:$0xff]
    %v512 = vld [vmem:[#allocation2 + $0x1c0] sm:$0xff]
    %v513 = vld [vmem:[#allocation2 + $0x1c8] sm:$0xff]
    %v514 = vld [vmem:[#allocation2 + $0x1d0] sm:$0xff]
    %v515 = vld [vmem:[#allocation2 + $0x1d8] sm:$0xff]
    %v516 = vld [vmem:[#allocation2 + $0x1e0] sm:$0xff]
    %v517 = vld [vmem:[#allocation2 + $0x1e8] sm:$0xff]
    %v518 = vld [vmem:[#allocation2 + $0x1f0] sm:$0xff]
    %v519 = vld [vmem:[#allocation2 + $0x1f8] sm:$0xff]
    %v520 = vunpack.c.l.bf16 %v456
    %v521 = vunpack.c.h.bf16 %v456
    %v522 = vunpack.c.l.bf16 %v457
    %v523 = vunpack.c.h.bf16 %v457
    %v524 = vunpack.c.l.bf16 %v458
    %v525 = vunpack.c.h.bf16 %v458
    %v526 = vunpack.c.l.bf16 %v459
    %v527 = vunpack.c.h.bf16 %v459
    %v528 = vunpack.c.l.bf16 %v460
    %v529 = vunpack.c.h.bf16 %v460
    %v530 = vunpack.c.l.bf16 %v461
    %v531 = vunpack.c.h.bf16 %v461
    %v532 = vunpack.c.l.bf16 %v462
    %v533 = vunpack.c.h.bf16 %v462
    %v534 = vunpack.c.l.bf16 %v463
    %v535 = vunpack.c.h.bf16 %v463
    %v536 = vunpack.c.l.bf16 %v464
    %v537 = vunpack.c.h.bf16 %v464
    %v538 = vunpack.c.l.bf16 %v465
    %v539 = vunpack.c.h.bf16 %v465
    %v540 = vunpack.c.l.bf16 %v466
    %v541 = vunpack.c.h.bf16 %v466
    %v542 = vunpack.c.l.bf16 %v467
    %v543 = vunpack.c.h.bf16 %v467
    %v544 = vunpack.c.l.bf16 %v468
    %v545 = vunpack.c.h.bf16 %v468
    %v546 = vunpack.c.l.bf16 %v469
    %v547 = vunpack.c.h.bf16 %v469
    %v548 = vunpack.c.l.bf16 %v470
    %v549 = vunpack.c.h.bf16 %v470
    %v550 = vunpack.c.l.bf16 %v471
    %v551 = vunpack.c.h.bf16 %v471
    %v552 = vunpack.c.l.bf16 %v472
    %v553 = vunpack.c.h.bf16 %v472
    %v554 = vunpack.c.l.bf16 %v473
    %v555 = vunpack.c.h.bf16 %v473
    %v556 = vunpack.c.l.bf16 %v474
    %v557 = vunpack.c.h.bf16 %v474
    %v558 = vunpack.c.l.bf16 %v475
    %v559 = vunpack.c.h.bf16 %v475
    %v560 = vunpack.c.l.bf16 %v476
    %v561 = vunpack.c.h.bf16 %v476
    %v562 = vunpack.c.l.bf16 %v477
    %v563 = vunpack.c.h.bf16 %v477
    %v564 = vunpack.c.l.bf16 %v478
    %v565 = vunpack.c.h.bf16 %v478
    %v566 = vunpack.c.l.bf16 %v479
    %v567 = vunpack.c.h.bf16 %v479
    %v568 = vunpack.c.l.bf16 %v480
    %v569 = vunpack.c.h.bf16 %v480
    %v570 = vunpack.c.l.bf16 %v481
    %v571 = vunpack.c.h.bf16 %v481
    %v572 = vunpack.c.l.bf16 %v482
    %v573 = vunpack.c.h.bf16 %v482
    %v574 = vunpack.c.l.bf16 %v483
    %v575 = vunpack.c.h.bf16 %v483
    %v576 = vunpack.c.l.bf16 %v484
    %v577 = vunpack.c.h.bf16 %v484
    %v578 = vunpack.c.l.bf16 %v485
    %v579 = vunpack.c.h.bf16 %v485
    %v580 = vunpack.c.l.bf16 %v486
    %v581 = vunpack.c.h.bf16 %v486
    %v582 = vunpack.c.l.bf16 %v487
    %v583 = vunpack.c.h.bf16 %v487
    %v584 = vunpack.c.l.bf16 %v488
    %v585 = vunpack.c.h.bf16 %v488
    %v586 = vunpack.c.l.bf16 %v489
    %v587 = vunpack.c.h.bf16 %v489
    %v588 = vunpack.c.l.bf16 %v490
    %v589 = vunpack.c.h.bf16 %v490
    %v590 = vunpack.c.l.bf16 %v491
    %v591 = vunpack.c.h.bf16 %v491
    %v592 = vunpack.c.l.bf16 %v492
    %v593 = vunpack.c.h.bf16 %v492
    %v594 = vunpack.c.l.bf16 %v493
    %v595 = vunpack.c.h.bf16 %v493
    %v596 = vunpack.c.l.bf16 %v494
    %v597 = vunpack.c.h.bf16 %v494
    %v598 = vunpack.c.l.bf16 %v495
    %v599 = vunpack.c.h.bf16 %v495
    %v600 = vunpack.c.l.bf16 %v496
    %v601 = vunpack.c.h.bf16 %v496
    %v602 = vunpack.c.l.bf16 %v497
    %v603 = vunpack.c.h.bf16 %v497
    %v604 = vunpack.c.l.bf16 %v498
    %v605 = vunpack.c.h.bf16 %v498
    %v606 = vunpack.c.l.bf16 %v499
    %v607 = vunpack.c.h.bf16 %v499
    %v608 = vunpack.c.l.bf16 %v500
    %v609 = vunpack.c.h.bf16 %v500
    %v610 = vunpack.c.l.bf16 %v501
    %v611 = vunpack.c.h.bf16 %v501
    %v612 = vunpack.c.l.bf16 %v502
    %v613 = vunpack.c.h.bf16 %v502
    %v614 = vunpack.c.l.bf16 %v503
    %v615 = vunpack.c.h.bf16 %v503
    %v616 = vunpack.c.l.bf16 %v504
    %v617 = vunpack.c.h.bf16 %v504
    %v618 = vunpack.c.l.bf16 %v505
    %v619 = vunpack.c.h.bf16 %v505
    %v620 = vunpack.c.l.bf16 %v506
    %v621 = vunpack.c.h.bf16 %v506
    %v622 = vunpack.c.l.bf16 %v507
    %v623 = vunpack.c.h.bf16 %v507
    %v624 = vunpack.c.l.bf16 %v508
    %v625 = vunpack.c.h.bf16 %v508
    %v626 = vunpack.c.l.bf16 %v509
    %v627 = vunpack.c.h.bf16 %v509
    %v628 = vunpack.c.l.bf16 %v510
    %v629 = vunpack.c.h.bf16 %v510
    %v630 = vunpack.c.l.bf16 %v511
    %v631 = vunpack.c.h.bf16 %v511
    %v632 = vunpack.c.l.bf16 %v512
    %v633 = vunpack.c.h.bf16 %v512
    %v634 = vunpack.c.l.bf16 %v513
    %v635 = vunpack.c.h.bf16 %v513
    %v636 = vunpack.c.l.bf16 %v514
    %v637 = vunpack.c.h.bf16 %v514
    %v638 = vunpack.c.l.bf16 %v515
    %v639 = vunpack.c.h.bf16 %v515
    %v640 = vunpack.c.l.bf16 %v516
    %v641 = vunpack.c.h.bf16 %v516
    %v642 = vunpack.c.l.bf16 %v517
    %v643 = vunpack.c.h.bf16 %v517
    %v644 = vunpack.c.l.bf16 %v518
    %v645 = vunpack.c.h.bf16 %v518
    %v646 = vunpack.c.l.bf16 %v519
    %v647 = vunpack.c.h.bf16 %v519
    %v648 = vld [vmem:[#allocation5] ss:$8 sm:$0x3]
    %s649 = scalar_lea.vmem [#allocation5], 1
    %v650 = vld [vmem:[%s649] ss:$8 sm:$0x3]
    %s651 = scalar_lea.vmem [#allocation5], 2
    %v652 = vld [vmem:[%s651] ss:$8 sm:$0x3]
    %v654 = vlaneseq
    %v655 = vshrl.u32 %v654, 7
    %v656 = vsub.s32 0, %v655
    %v657 = vrot.slane %v648, %v656
    %v658 = vlaneseq
    %v659 = vshrl.u32 %v658, 7
    %v660 = vsub.s32 1, %v659
    %v661 = vrot.slane %v648, %v660
    %664 = vmatprep.subr.mxu0 %v521
    %665 = vmatpush1.msra.mxu0 %v520
    %666 = vmatprep.subr.mxu0 %v523
    %667 = vmatpush1.msra.mxu0 %v522
    %668 = vmatprep.subr.mxu0 %v525
    %669 = vmatpush1.msra.mxu0 %v524
    %670 = vmatprep.subr.mxu0 %v527
    %671 = vmatpush1.msra.mxu0 %v526
    %672 = vmatprep.subr.mxu0 %v529
    %673 = vmatpush1.msra.mxu0 %v528
    %674 = vmatprep.subr.mxu0 %v531
    %675 = vmatpush1.msra.mxu0 %v530
    %676 = vmatprep.subr.mxu0 %v533
    %677 = vmatpush1.msra.mxu0 %v532
    %678 = vmatprep.subr.mxu0 %v535
    %679 = vmatpush1.msra.mxu0 %v534
    %680 = vmatprep.subr.mxu0 %v537
    %681 = vmatpush1.msra.mxu0 %v536
    %682 = vmatprep.subr.mxu0 %v539
    %683 = vmatpush1.msra.mxu0 %v538
    %684 = vmatprep.subr.mxu0 %v541
    %685 = vmatpush1.msra.mxu0 %v540
    %686 = vmatprep.subr.mxu0 %v543
    %687 = vmatpush1.msra.mxu0 %v542
    %688 = vmatprep.subr.mxu0 %v545
    %689 = vmatpush1.msra.mxu0 %v544
    %690 = vmatprep.subr.mxu0 %v547
    %691 = vmatpush1.msra.mxu0 %v546
    %692 = vmatprep.subr.mxu0 %v549
    %693 = vmatpush1.msra.mxu0 %v548
    %694 = vmatprep.subr.mxu0 %v551
    %695 = vmatpush1.msra.mxu0 %v550
    %696 = vmatprep.subr.mxu0 %v553
    %697 = vmatpush1.msra.mxu0 %v552
    %698 = vmatprep.subr.mxu0 %v555
    %699 = vmatpush1.msra.mxu0 %v554
    %700 = vmatprep.subr.mxu0 %v557
    %701 = vmatpush1.msra.mxu0 %v556
    %702 = vmatprep.subr.mxu0 %v559
    %703 = vmatpush1.msra.mxu0 %v558
    %704 = vmatprep.subr.mxu0 %v561
    %705 = vmatpush1.msra.mxu0 %v560
    %706 = vmatprep.subr.mxu0 %v563
    %707 = vmatpush1.msra.mxu0 %v562
    %708 = vmatprep.subr.mxu0 %v565
    %709 = vmatpush1.msra.mxu0 %v564
    %710 = vmatprep.subr.mxu0 %v567
    %711 = vmatpush1.msra.mxu0 %v566
    %712 = vmatprep.subr.mxu0 %v569
    %713 = vmatpush1.msra.mxu0 %v568
    %714 = vmatprep.subr.mxu0 %v571
    %715 = vmatpush1.msra.mxu0 %v570
    %716 = vmatprep.subr.mxu0 %v573
    %717 = vmatpush1.msra.mxu0 %v572
    %718 = vmatprep.subr.mxu0 %v575
    %719 = vmatpush1.msra.mxu0 %v574
    %720 = vmatprep.subr.mxu0 %v577
    %721 = vmatpush1.msra.mxu0 %v576
    %722 = vmatprep.subr.mxu0 %v579
    %723 = vmatpush1.msra.mxu0 %v578
    %724 = vmatprep.subr.mxu0 %v581
    %725 = vmatpush1.msra.mxu0 %v580
    %726 = vmatprep.subr.mxu0 %v583
    %727 = vmatpush1.msra.mxu0 %v582
    %728 = vmatprep.mubr.f32.mxu0 %v453
    %729 = vmatmul.mubr.f32.gmra.mrb[0].mxu0 %v452
    %v730 = vpop.f32.mrb[0].mxu0
    %v731 = vadd.f32 %v657, %v730
    %v732 = vpop.f32.mrb[0].mxu0
    %v733 = vadd.f32 %v661, %v732
    %734 = vdwg.mxu0
    %735 = vmatprep.subr.mxu0 %v585
    %736 = vmatpush1.msra.mxu0 %v584
    %737 = vmatprep.subr.mxu0 %v587
    %738 = vmatpush1.msra.mxu0 %v586
    %739 = vmatprep.subr.mxu0 %v589
    %740 = vmatpush1.msra.mxu0 %v588
    %741 = vmatprep.subr.mxu0 %v591
    %742 = vmatpush1.msra.mxu0 %v590
    %743 = vmatprep.subr.mxu0 %v593
    %744 = vmatpush1.msra.mxu0 %v592
    %745 = vmatprep.subr.mxu0 %v595
    %746 = vmatpush1.msra.mxu0 %v594
    %747 = vmatprep.subr.mxu0 %v597
    %748 = vmatpush1.msra.mxu0 %v596
    %749 = vmatprep.subr.mxu0 %v599
    %750 = vmatpush1.msra.mxu0 %v598
    %751 = vmatprep.subr.mxu0 %v601
    %752 = vmatpush1.msra.mxu0 %v600
    %753 = vmatprep.subr.mxu0 %v603
    %754 = vmatpush1.msra.mxu0 %v602
    %755 = vmatprep.subr.mxu0 %v605
    %756 = vmatpush1.msra.mxu0 %v604
    %757 = vmatprep.subr.mxu0 %v607
    %758 = vmatpush1.msra.mxu0 %v606
    %759 = vmatprep.subr.mxu0 %v609
    %760 = vmatpush1.msra.mxu0 %v608
    %761 = vmatprep.subr.mxu0 %v611
    %762 = vmatpush1.msra.mxu0 %v610
    %763 = vmatprep.subr.mxu0 %v613
    %764 = vmatpush1.msra.mxu0 %v612
    %765 = vmatprep.subr.mxu0 %v615
    %766 = vmatpush1.msra.mxu0 %v614
    %767 = vmatprep.subr.mxu0 %v617
    %768 = vmatpush1.msra.mxu0 %v616
    %769 = vmatprep.subr.mxu0 %v619
    %770 = vmatpush1.msra.mxu0 %v618
    %771 = vmatprep.subr.mxu0 %v621
    %772 = vmatpush1.msra.mxu0 %v620
    %773 = vmatprep.subr.mxu0 %v623
    %774 = vmatpush1.msra.mxu0 %v622
    %775 = vmatprep.subr.mxu0 %v625
    %776 = vmatpush1.msra.mxu0 %v624
    %777 = vmatprep.subr.mxu0 %v627
    %778 = vmatpush1.msra.mxu0 %v626
    %779 = vmatprep.subr.mxu0 %v629
    %780 = vmatpush1.msra.mxu0 %v628
    %781 = vmatprep.subr.mxu0 %v631
    %782 = vmatpush1.msra.mxu0 %v630
    %783 = vmatprep.subr.mxu0 %v633
    %784 = vmatpush1.msra.mxu0 %v632
    %785 = vmatprep.subr.mxu0 %v635
    %786 = vmatpush1.msra.mxu0 %v634
    %787 = vmatprep.subr.mxu0 %v637
    %788 = vmatpush1.msra.mxu0 %v636
    %789 = vmatprep.subr.mxu0 %v639
    %790 = vmatpush1.msra.mxu0 %v638
    %791 = vmatprep.subr.mxu0 %v641
    %792 = vmatpush1.msra.mxu0 %v640
    %793 = vmatprep.subr.mxu0 %v643
    %794 = vmatpush1.msra.mxu0 %v642
    %795 = vmatprep.subr.mxu0 %v645
    %796 = vmatpush1.msra.mxu0 %v644
    %797 = vmatprep.subr.mxu0 %v647
    %798 = vmatpush1.msra.mxu0 %v646
    %799 = vmatprep.mubr.f32.mxu0 %v455
    %800 = vmatmul.mubr.f32.gmra.mrb[0].mxu0 %v454
    %v801 = vpop.f32.mrb[0].mxu0
    %v802 = vadd.f32 %v731, %v801
    %v803 = vpop.f32.mrb[0].mxu0
    %v804 = vadd.f32 %v733, %v803
    %805 = vdwg.mxu0
    %v806 = vadd.f32 %v802, %v804
    %807 = vadd.xlane.f32.xlu0 %v806
    %v808 = vpop.xlane.xlu0 %807
    %v809 = vrcp.pop 256.0
    %v810 = vmul.f32 %v808, %v809
    %v811 = vsub.f32 %v802, %v810
    %v812 = vsub.f32 %v804, %v810
    %v813 = vmul.f32 %v811, %v811
    %v814 = vmul.f32 %v812, %v812
    %v815 = vadd.f32 %v813, %v814
    %816 = vadd.xlane.f32.xlu0 %v815
    %v817 = vpop.xlane.xlu0 %816
    %v818 = vmul.f32 %v817, %v809
    %v819 = vadd.f32 %v818, 1e-05
    %v820 = vrsqrt.pop %v819
    %v821 = vmul.f32 %v811, %v820
    %v822 = vmul.f32 %v812, %v820
    %v824 = vlaneseq
    %v825 = vshrl.u32 %v824, 7
    %v826 = vsub.s32 0, %v825
    %v827 = vrot.slane %v650, %v826
    %v828 = vlaneseq
    %v829 = vshrl.u32 %v828, 7
    %v830 = vsub.s32 1, %v829
    %v831 = vrot.slane %v650, %v830
    %v834 = vmul.f32 %v821, %v827
    %v835 = vmul.f32 %v822, %v831
    %v837 = vlaneseq
    %v838 = vshrl.u32 %v837, 7
    %v839 = vsub.s32 0, %v838
    %v840 = vrot.slane %v652, %v839
    %v841 = vlaneseq
    %v842 = vshrl.u32 %v841, 7
    %v843 = vsub.s32 1, %v842
    %v844 = vrot.slane %v652, %v843
    %v847 = vadd.f32 %v834, %v840
    %v848 = vadd.f32 %v835, %v844
    %vm849 = vcmp.ge.f32.partialorder %v847, 0.0
    %vm850 = vcmp.ge.f32.partialorder %v848, 0.0
    %v851 = vmul.f32 %v847, 0.02
    %v852 = vmul.f32 %v848, 0.02
    %v853 = vsel %vm849, %v847, %v851
    %v854 = vsel %vm850, %v848, %v852
    %v855 = vld [vmem:[%s6] sm:$0xf]
    %v856 = vld [vmem:[%s6 + $0x4] sm:$0xf]
    %v857 = vld [vmem:[%s6 + $0x8] sm:$0xf]
    %v858 = vld [vmem:[%s6 + $0xc] sm:$0xf]
    %v859 = vld [vmem:[%s6 + $0x10] sm:$0xf]
    %v860 = vld [vmem:[%s6 + $0x14] sm:$0xf]
    %v861 = vld [vmem:[%s6 + $0x18] sm:$0xf]
    %v862 = vld [vmem:[%s6 + $0x1c] sm:$0xf]
    %v863 = vld [vmem:[%s6 + $0x20] sm:$0xf]
    %v864 = vld [vmem:[%s6 + $0x24] sm:$0xf]
    %v865 = vld [vmem:[%s6 + $0x28] sm:$0xf]
    %v866 = vld [vmem:[%s6 + $0x2c] sm:$0xf]
    %v867 = vld [vmem:[%s6 + $0x30] sm:$0xf]
    %v868 = vld [vmem:[%s6 + $0x34] sm:$0xf]
    %v869 = vld [vmem:[%s6 + $0x38] sm:$0xf]
    %v870 = vld [vmem:[%s6 + $0x3c] sm:$0xf]
    %v871 = vld [vmem:[%s6 + $0x40] sm:$0xf]
    %v872 = vld [vmem:[%s6 + $0x44] sm:$0xf]
    %v873 = vld [vmem:[%s6 + $0x48] sm:$0xf]
    %v874 = vld [vmem:[%s6 + $0x4c] sm:$0xf]
    %v875 = vld [vmem:[%s6 + $0x50] sm:$0xf]
    %v876 = vld [vmem:[%s6 + $0x54] sm:$0xf]
    %v877 = vld [vmem:[%s6 + $0x58] sm:$0xf]
    %v878 = vld [vmem:[%s6 + $0x5c] sm:$0xf]
    %v879 = vld [vmem:[%s6 + $0x60] sm:$0xf]
    %v880 = vld [vmem:[%s6 + $0x64] sm:$0xf]
    %v881 = vld [vmem:[%s6 + $0x68] sm:$0xf]
    %v882 = vld [vmem:[%s6 + $0x6c] sm:$0xf]
    %v883 = vld [vmem:[%s6 + $0x70] sm:$0xf]
    %v884 = vld [vmem:[%s6 + $0x74] sm:$0xf]
    %v885 = vld [vmem:[%s6 + $0x78] sm:$0xf]
    %v886 = vld [vmem:[%s6 + $0x7c] sm:$0xf]
    %v887 = vunpack.c.l.bf16 %v855
    %v888 = vunpack.c.l.bf16 %v856
    %v889 = vunpack.c.l.bf16 %v857
    %v890 = vunpack.c.l.bf16 %v858
    %v891 = vunpack.c.l.bf16 %v859
    %v892 = vunpack.c.l.bf16 %v860
    %v893 = vunpack.c.l.bf16 %v861
    %v894 = vunpack.c.l.bf16 %v862
    %v895 = vunpack.c.l.bf16 %v863
    %v896 = vunpack.c.l.bf16 %v864
    %v897 = vunpack.c.l.bf16 %v865
    %v898 = vunpack.c.l.bf16 %v866
    %v899 = vunpack.c.l.bf16 %v867
    %v900 = vunpack.c.l.bf16 %v868
    %v901 = vunpack.c.l.bf16 %v869
    %v902 = vunpack.c.l.bf16 %v870
    %v903 = vunpack.c.l.bf16 %v871
    %v904 = vunpack.c.l.bf16 %v872
    %v905 = vunpack.c.l.bf16 %v873
    %v906 = vunpack.c.l.bf16 %v874
    %v907 = vunpack.c.l.bf16 %v875
    %v908 = vunpack.c.l.bf16 %v876
    %v909 = vunpack.c.l.bf16 %v877
    %v910 = vunpack.c.l.bf16 %v878
    %v911 = vunpack.c.l.bf16 %v879
    %v912 = vunpack.c.l.bf16 %v880
    %v913 = vunpack.c.l.bf16 %v881
    %v914 = vunpack.c.l.bf16 %v882
    %v915 = vunpack.c.l.bf16 %v883
    %v916 = vunpack.c.l.bf16 %v884
    %v917 = vunpack.c.l.bf16 %v885
    %v918 = vunpack.c.l.bf16 %v886
    %v919 = vld [vmem:[#allocation7] sm:$0x1]
    %v920 = vld [vmem:[#allocation7 + $0x1] sm:$0x1]
    %v921 = vld [vmem:[#allocation7 + $0x2] sm:$0x1]
    %v922 = vlaneseq
    %v923 = vshrl.u32 %v922, 7
    %v924 = vsub.s32 0, %v923
    %v925 = vrot.slane %v919, %v924
    %926 = vmatprep.subr.mxu0 0.0
    %927 = vmatpush1.msra.mxu0 %v887
    %928 = vmatprep.subr.mxu0 0.0
    %929 = vmatpush1.msra.mxu0 %v888
    %930 = vmatprep.subr.mxu0 0.0
    %931 = vmatpush1.msra.mxu0 %v889
    %932 = vmatprep.subr.mxu0 0.0
    %933 = vmatpush1.msra.mxu0 %v890
    %934 = vmatprep.subr.mxu0 0.0
    %935 = vmatpush1.msra.mxu0 %v891
    %936 = vmatprep.subr.mxu0 0.0
    %937 = vmatpush1.msra.mxu0 %v892
    %938 = vmatprep.subr.mxu0 0.0
    %939 = vmatpush1.msra.mxu0 %v893
    %940 = vmatprep.subr.mxu0 0.0
    %941 = vmatpush1.msra.mxu0 %v894
    %942 = vmatprep.subr.mxu0 0.0
    %943 = vmatpush1.msra.mxu0 %v895
    %944 = vmatprep.subr.mxu0 0.0
    %945 = vmatpush1.msra.mxu0 %v896
    %946 = vmatprep.subr.mxu0 0.0
    %947 = vmatpush1.msra.mxu0 %v897
    %948 = vmatprep.subr.mxu0 0.0
    %949 = vmatpush1.msra.mxu0 %v898
    %950 = vmatprep.subr.mxu0 0.0
    %951 = vmatpush1.msra.mxu0 %v899
    %952 = vmatprep.subr.mxu0 0.0
    %953 = vmatpush1.msra.mxu0 %v900
    %954 = vmatprep.subr.mxu0 0.0
    %955 = vmatpush1.msra.mxu0 %v901
    %956 = vmatprep.subr.mxu0 0.0
    %957 = vmatpush1.msra.mxu0 %v902
    %958 = vmatprep.subr.mxu0 0.0
    %959 = vmatpush1.msra.mxu0 %v903
    %960 = vmatprep.subr.mxu0 0.0
    %961 = vmatpush1.msra.mxu0 %v904
    %962 = vmatprep.subr.mxu0 0.0
    %963 = vmatpush1.msra.mxu0 %v905
    %964 = vmatprep.subr.mxu0 0.0
    %965 = vmatpush1.msra.mxu0 %v906
    %966 = vmatprep.subr.mxu0 0.0
    %967 = vmatpush1.msra.mxu0 %v907
    %968 = vmatprep.subr.mxu0 0.0
    %969 = vmatpush1.msra.mxu0 %v908
    %970 = vmatprep.subr.mxu0 0.0
    %971 = vmatpush1.msra.mxu0 %v909
    %972 = vmatprep.subr.mxu0 0.0
    %973 = vmatpush1.msra.mxu0 %v910
    %974 = vmatprep.subr.mxu0 0.0
    %975 = vmatpush1.msra.mxu0 %v911
    %976 = vmatprep.subr.mxu0 0.0
    %977 = vmatpush1.msra.mxu0 %v912
    %978 = vmatprep.subr.mxu0 0.0
    %979 = vmatpush1.msra.mxu0 %v913
    %980 = vmatprep.subr.mxu0 0.0
    %981 = vmatpush1.msra.mxu0 %v914
    %982 = vmatprep.subr.mxu0 0.0
    %983 = vmatpush1.msra.mxu0 %v915
    %984 = vmatprep.subr.mxu0 0.0
    %985 = vmatpush1.msra.mxu0 %v916
    %986 = vmatprep.subr.mxu0 0.0
    %987 = vmatpush1.msra.mxu0 %v917
    %988 = vmatprep.subr.mxu0 0.0
    %989 = vmatpush1.msra.mxu0 %v918
    %990 = vmatprep.mubr.f32.mxu0 %v854
    %991 = vmatmul.mubr.f32.gmra.mrb[0].mxu0 %v853
    %v992 = vpop.f32.mrb[0].mxu0
    %v993 = vadd.f32 %v925, %v992
    %v994 = vpop.f32.mrb[0].mxu0
    %995 = vdwg.mxu0
    %996 = vadd.xlane.f32.xlu0 %v993
    %v997 = vpop.xlane.xlu0 %996
    %v998 = vrcp.pop 128.0
    %v999 = vmul.f32 %v997, %v998
    %v1000 = vsub.f32 %v993, %v999
    %v1001 = vmul.f32 %v1000, %v1000
    %1002 = vadd.xlane.f32.xlu0 %v1001
    %v1003 = vpop.xlane.xlu0 %1002
    %v1004 = vmul.f32 %v1003, %v998
    %v1005 = vadd.f32 %v1004, 1e-05
    %v1006 = vrsqrt.pop %v1005
    %v1007 = vmul.f32 %v1000, %v1006
    %v1008 = vlaneseq
    %v1009 = vshrl.u32 %v1008, 7
    %v1010 = vsub.s32 0, %v1009
    %v1011 = vrot.slane %v920, %v1010
    %v1012 = vmul.f32 %v1007, %v1011
    %v1013 = vlaneseq
    %v1014 = vshrl.u32 %v1013, 7
    %v1015 = vsub.s32 0, %v1014
    %v1016 = vrot.slane %v921, %v1015
    %v1017 = vadd.f32 %v1012, %v1016
    %vm1018 = vcmp.ge.f32.partialorder %v1017, 0.0
    %v1019 = vmul.f32 %v1017, 0.02
    %v1020 = vsel %vm1018, %v1017, %v1019
    %v1021 = vld [vmem:[%s8] sm:$0xf]
    %v1022 = vld [vmem:[%s8 + $0x4] sm:$0xf]
    %v1023 = vld [vmem:[%s8 + $0x8] sm:$0xf]
    %v1024 = vld [vmem:[%s8 + $0xc] sm:$0xf]
    %v1025 = vld [vmem:[%s8 + $0x10] sm:$0xf]
    %v1026 = vld [vmem:[%s8 + $0x14] sm:$0xf]
    %v1027 = vld [vmem:[%s8 + $0x18] sm:$0xf]
    %v1028 = vld [vmem:[%s8 + $0x1c] sm:$0xf]
    %v1029 = vld [vmem:[%s8 + $0x20] sm:$0xf]
    %v1030 = vld [vmem:[%s8 + $0x24] sm:$0xf]
    %v1031 = vld [vmem:[%s8 + $0x28] sm:$0xf]
    %v1032 = vld [vmem:[%s8 + $0x2c] sm:$0xf]
    %v1033 = vld [vmem:[%s8 + $0x30] sm:$0xf]
    %v1034 = vld [vmem:[%s8 + $0x34] sm:$0xf]
    %v1035 = vld [vmem:[%s8 + $0x38] sm:$0xf]
    %v1036 = vld [vmem:[%s8 + $0x3c] sm:$0xf]
    %v1037 = vunpack.c.l.bf16 %v1021
    %v1038 = vunpack.c.l.bf16 %v1022
    %v1039 = vunpack.c.l.bf16 %v1023
    %v1040 = vunpack.c.l.bf16 %v1024
    %v1041 = vunpack.c.l.bf16 %v1025
    %v1042 = vunpack.c.l.bf16 %v1026
    %v1043 = vunpack.c.l.bf16 %v1027
    %v1044 = vunpack.c.l.bf16 %v1028
    %v1045 = vunpack.c.l.bf16 %v1029
    %v1046 = vunpack.c.l.bf16 %v1030
    %v1047 = vunpack.c.l.bf16 %v1031
    %v1048 = vunpack.c.l.bf16 %v1032
    %v1049 = vunpack.c.l.bf16 %v1033
    %v1050 = vunpack.c.l.bf16 %v1034
    %v1051 = vunpack.c.l.bf16 %v1035
    %v1052 = vunpack.c.l.bf16 %v1036
    %v1053 = vld [vmem:[#allocation8] sm:$0x1]
    %v1055 = vlaneseq
    %v1056 = vshrl.u32 %v1055, 7
    %v1057 = vsub.s32 0, %v1056
    %v1058 = vrot.slane %v1053, %v1057
    %1060 = vmatprep.subr.mxu0 0.0
    %1061 = vmatpush1.msra.mxu0 %v1037
    %1062 = vmatprep.subr.mxu0 0.0
    %1063 = vmatpush1.msra.mxu0 %v1038
    %1064 = vmatprep.subr.mxu0 0.0
    %1065 = vmatpush1.msra.mxu0 %v1039
    %1066 = vmatprep.subr.mxu0 0.0
    %1067 = vmatpush1.msra.mxu0 %v1040
    %1068 = vmatprep.subr.mxu0 0.0
    %1069 = vmatpush1.msra.mxu0 %v1041
    %1070 = vmatprep.subr.mxu0 0.0
    %1071 = vmatpush1.msra.mxu0 %v1042
    %1072 = vmatprep.subr.mxu0 0.0
    %1073 = vmatpush1.msra.mxu0 %v1043
    %1074 = vmatprep.subr.mxu0 0.0
    %1075 = vmatpush1.msra.mxu0 %v1044
    %1076 = vmatprep.subr.mxu0 0.0
    %1077 = vmatpush1.msra.mxu0 %v1045
    %1078 = vmatprep.subr.mxu0 0.0
    %1079 = vmatpush1.msra.mxu0 %v1046
    %1080 = vmatprep.subr.mxu0 0.0
    %1081 = vmatpush1.msra.mxu0 %v1047
    %1082 = vmatprep.subr.mxu0 0.0
    %1083 = vmatpush1.msra.mxu0 %v1048
    %1084 = vmatprep.subr.mxu0 0.0
    %1085 = vmatpush1.msra.mxu0 %v1049
    %1086 = vmatprep.subr.mxu0 0.0
    %1087 = vmatpush1.msra.mxu0 %v1050
    %1088 = vmatprep.subr.mxu0 0.0
    %1089 = vmatpush1.msra.mxu0 %v1051
    %1090 = vmatprep.subr.mxu0 0.0
    %1091 = vmatpush1.msra.mxu0 %v1052
    %1092 = vmatprep.subr.mxu0 0.0
    %1093 = vmatpush1.msra.mxu0 0.0
    %1094 = vmatprep.subr.mxu0 0.0
    %1095 = vmatpush1.msra.mxu0 0.0
    %1096 = vmatprep.subr.mxu0 0.0
    %1097 = vmatpush1.msra.mxu0 0.0
    %1098 = vmatprep.subr.mxu0 0.0
    %1099 = vmatpush1.msra.mxu0 0.0
    %1100 = vmatprep.subr.mxu0 0.0
    %1101 = vmatpush1.msra.mxu0 0.0
    %1102 = vmatprep.subr.mxu0 0.0
    %1103 = vmatpush1.msra.mxu0 0.0
    %1104 = vmatprep.subr.mxu0 0.0
    %1105 = vmatpush1.msra.mxu0 0.0
    %1106 = vmatprep.subr.mxu0 0.0
    %1107 = vmatpush1.msra.mxu0 0.0
    %1108 = vmatprep.subr.mxu0 0.0
    %1109 = vmatpush1.msra.mxu0 0.0
    %1110 = vmatprep.subr.mxu0 0.0
    %1111 = vmatpush1.msra.mxu0 0.0
    %1112 = vmatprep.subr.mxu0 0.0
    %1113 = vmatpush1.msra.mxu0 0.0
    %1114 = vmatprep.subr.mxu0 0.0
    %1115 = vmatpush1.msra.mxu0 0.0
    %1116 = vmatprep.subr.mxu0 0.0
    %1117 = vmatpush1.msra.mxu0 0.0
    %1118 = vmatprep.subr.mxu0 0.0
    %1119 = vmatpush1.msra.mxu0 0.0
    %1120 = vmatprep.subr.mxu0 0.0
    %1121 = vmatpush1.msra.mxu0 0.0
    %1122 = vmatprep.subr.mxu0 0.0
    %1123 = vmatpush1.msra.mxu0 0.0
    %1124 = vmatprep.mubr.f32.mxu0 0.0
    %1125 = vmatmul.mubr.f32.gmra.mrb[0].mxu0 %v1020
    %v1126 = vpop.f32.mrb[0].mxu0
    %v1127 = vadd.f32 %v1058, %v1126
    %v1128 = vpop.f32.mrb[0].mxu0
    %1129 = vdwg.mxu0
    %v1130 = vmul.f32 %v1127, 0.5
    %v1131 = vmul.f32 %v1130, 1.442695
    %v1132 = vpow.pop %v1131
    %v1133 = vld [vmem:[%s1] sm:$0xff]
    %1135 = vrot.lane.b32.xlu0 %v1133, 2
    %v1136 = vpop.permute.xlu0 %1135
    %v1138 = vmul.f32 %v1132, %v1136
    %1140 = vrot.lane.b32.xlu0 %v1138, 126
    %v1141 = vpop.permute.xlu0 %1140
    %v1143 = vadd.f32 %v1127, %v1141
    %v1144 = vld [vmem:[#allocation10] sm:$0x1]
    %v1145 = vunpack.c.l.bf16 %v1144
    %v1146 = vld [vmem:[#allocation11] sm:$0x1]
    %v1147 = vld [vmem:[#allocation11 + $0x1] sm:$0x1]
    %v1148 = vld [vmem:[#allocation11 + $0x2] sm:$0x1]
    %v1149 = vlaneseq
    %v1150 = vshrl.u32 %v1149, 7
    %v1151 = vsub.s32 0, %v1150
    %v1152 = vrot.slane %v1146, %v1151
    %vm1153 = vcmask 15360
    %v1155 = vsel %vm1153, %v1143, 0
    %vm1157 = vcmask 1041408
    %v1159 = vsel %vm1157, %v1145, 0
    %1161 = vmatprep.subr.mxu0 0.0
    %1162 = vmatpush1.msra.mxu0 %v1159
    %1163 = vmatprep.subr.mxu0 0.0
    %1164 = vmatpush1.msra.mxu0 0.0
    %1165 = vmatprep.subr.mxu0 0.0
    %1166 = vmatpush1.msra.mxu0 0.0
    %1167 = vmatprep.subr.mxu0 0.0
    %1168 = vmatpush1.msra.mxu0 0.0
    %1169 = vmatprep.subr.mxu0 0.0
    %1170 = vmatpush1.msra.mxu0 0.0
    %1171 = vmatprep.subr.mxu0 0.0
    %1172 = vmatpush1.msra.mxu0 0.0
    %1173 = vmatprep.subr.mxu0 0.0
    %1174 = vmatpush1.msra.mxu0 0.0
    %1175 = vmatprep.subr.mxu0 0.0
    %1176 = vmatpush1.msra.mxu0 0.0
    %1177 = vmatprep.subr.mxu0 0.0
    %1178 = vmatpush1.msra.mxu0 0.0
    %1179 = vmatprep.subr.mxu0 0.0
    %1180 = vmatpush1.msra.mxu0 0.0
    %1181 = vmatprep.subr.mxu0 0.0
    %1182 = vmatpush1.msra.mxu0 0.0
    %1183 = vmatprep.subr.mxu0 0.0
    %1184 = vmatpush1.msra.mxu0 0.0
    %1185 = vmatprep.subr.mxu0 0.0
    %1186 = vmatpush1.msra.mxu0 0.0
    %1187 = vmatprep.subr.mxu0 0.0
    %1188 = vmatpush1.msra.mxu0 0.0
    %1189 = vmatprep.subr.mxu0 0.0
    %1190 = vmatpush1.msra.mxu0 0.0
    %1191 = vmatprep.subr.mxu0 0.0
    %1192 = vmatpush1.msra.mxu0 0.0
    %1193 = vmatprep.subr.mxu0 0.0
    %1194 = vmatpush1.msra.mxu0 0.0
    %1195 = vmatprep.subr.mxu0 0.0
    %1196 = vmatpush1.msra.mxu0 0.0
    %1197 = vmatprep.subr.mxu0 0.0
    %1198 = vmatpush1.msra.mxu0 0.0
    %1199 = vmatprep.subr.mxu0 0.0
    %1200 = vmatpush1.msra.mxu0 0.0
    %1201 = vmatprep.subr.mxu0 0.0
    %1202 = vmatpush1.msra.mxu0 0.0
    %1203 = vmatprep.subr.mxu0 0.0
    %1204 = vmatpush1.msra.mxu0 0.0
    %1205 = vmatprep.subr.mxu0 0.0
    %1206 = vmatpush1.msra.mxu0 0.0
    %1207 = vmatprep.subr.mxu0 0.0
    %1208 = vmatpush1.msra.mxu0 0.0
    %1209 = vmatprep.subr.mxu0 0.0
    %1210 = vmatpush1.msra.mxu0 0.0
    %1211 = vmatprep.subr.mxu0 0.0
    %1212 = vmatpush1.msra.mxu0 0.0
    %1213 = vmatprep.subr.mxu0 0.0
    %1214 = vmatpush1.msra.mxu0 0.0
    %1215 = vmatprep.subr.mxu0 0.0
    %1216 = vmatpush1.msra.mxu0 0.0
    %1217 = vmatprep.subr.mxu0 0.0
    %1218 = vmatpush1.msra.mxu0 0.0
    %1219 = vmatprep.subr.mxu0 0.0
    %1220 = vmatpush1.msra.mxu0 0.0
    %1221 = vmatprep.subr.mxu0 0.0
    %1222 = vmatpush1.msra.mxu0 0.0
    %1223 = vmatprep.subr.mxu0 0.0
    %1224 = vmatpush1.msra.mxu0 0.0
    %1225 = vmatprep.mubr.f32.mxu0 0.0
    %1226 = vmatmul.mubr.f32.gmra.mrb[0].mxu0 %v1155
    %v1227 = vpop.f32.mrb[0].mxu0
    %v1228 = vadd.f32 %v1152, %v1227
    %v1229 = vpop.f32.mrb[0].mxu0
    %1230 = vdwg.mxu0
    %1231 = vadd.xlane.f32.xlu0 %v1228
    %v1232 = vpop.xlane.xlu0 %1231
    %v1233 = vmul.f32 %v1232, %v998
    %v1234 = vsub.f32 %v1228, %v1233
    %v1235 = vmul.f32 %v1234, %v1234
    %1236 = vadd.xlane.f32.xlu0 %v1235
    %v1237 = vpop.xlane.xlu0 %1236
    %v1238 = vmul.f32 %v1237, %v998
    %v1239 = vadd.f32 %v1238, 1e-05
    %v1240 = vrsqrt.pop %v1239
    %v1241 = vmul.f32 %v1234, %v1240
    %v1242 = vlaneseq
    %v1243 = vshrl.u32 %v1242, 7
    %v1244 = vsub.s32 0, %v1243
    %v1245 = vrot.slane %v1147, %v1244
    %v1246 = vmul.f32 %v1241, %v1245
    %v1247 = vlaneseq
    %v1248 = vshrl.u32 %v1247, 7
    %v1249 = vsub.s32 0, %v1248
    %v1250 = vrot.slane %v1148, %v1249
    %v1251 = vadd.f32 %v1246, %v1250
    %vm1252 = vcmp.ge.f32.partialorder %v1251, 0.0
    %v1253 = vmul.f32 %v1251, 0.02
    %v1254 = vsel %vm1252, %v1251, %v1253
    %v1255 = vld [vmem:[%s12] sm:$0xff]
    %v1256 = vld [vmem:[%s12 + $0x8] sm:$0xff]
    %v1257 = vld [vmem:[%s12 + $0x10] sm:$0xff]
    %v1258 = vld [vmem:[%s12 + $0x18] sm:$0xff]
    %v1259 = vld [vmem:[%s12 + $0x20] sm:$0xff]
    %v1260 = vld [vmem:[%s12 + $0x28] sm:$0xff]
    %v1261 = vld [vmem:[%s12 + $0x30] sm:$0xff]
    %v1262 = vld [vmem:[%s12 + $0x38] sm:$0xff]
    %v1263 = vld [vmem:[%s12 + $0x40] sm:$0xff]
    %v1264 = vld [vmem:[%s12 + $0x48] sm:$0xff]
    %v1265 = vld [vmem:[%s12 + $0x50] sm:$0xff]
    %v1266 = vld [vmem:[%s12 + $0x58] sm:$0xff]
    %v1267 = vld [vmem:[%s12 + $0x60] sm:$0xff]
    %v1268 = vld [vmem:[%s12 + $0x68] sm:$0xff]
    %v1269 = vld [vmem:[%s12 + $0x70] sm:$0xff]
    %v1270 = vld [vmem:[%s12 + $0x78] sm:$0xff]
    %v1271 = vunpack.c.l.bf16 %v1255
    %v1272 = vunpack.c.h.bf16 %v1255
    %v1273 = vunpack.c.l.bf16 %v1256
    %v1274 = vunpack.c.h.bf16 %v1256
    %v1275 = vunpack.c.l.bf16 %v1257
    %v1276 = vunpack.c.h.bf16 %v1257
    %v1277 = vunpack.c.l.bf16 %v1258
    %v1278 = vunpack.c.h.bf16 %v1258
    %v1279 = vunpack.c.l.bf16 %v1259
    %v1280 = vunpack.c.h.bf16 %v1259
    %v1281 = vunpack.c.l.bf16 %v1260
    %v1282 = vunpack.c.h.bf16 %v1260
    %v1283 = vunpack.c.l.bf16 %v1261
    %v1284 = vunpack.c.h.bf16 %v1261
    %v1285 = vunpack.c.l.bf16 %v1262
    %v1286 = vunpack.c.h.bf16 %v1262
    %v1287 = vunpack.c.l.bf16 %v1263
    %v1288 = vunpack.c.h.bf16 %v1263
    %v1289 = vunpack.c.l.bf16 %v1264
    %v1290 = vunpack.c.h.bf16 %v1264
    %v1291 = vunpack.c.l.bf16 %v1265
    %v1292 = vunpack.c.h.bf16 %v1265
    %v1293 = vunpack.c.l.bf16 %v1266
    %v1294 = vunpack.c.h.bf16 %v1266
    %v1295 = vunpack.c.l.bf16 %v1267
    %v1296 = vunpack.c.h.bf16 %v1267
    %v1297 = vunpack.c.l.bf16 %v1268
    %v1298 = vunpack.c.h.bf16 %v1268
    %v1299 = vunpack.c.l.bf16 %v1269
    %v1300 = vunpack.c.h.bf16 %v1269
    %v1301 = vunpack.c.l.bf16 %v1270
    %v1302 = vunpack.c.h.bf16 %v1270
    %v1303 = vld [vmem:[#allocation13] ss:$8 sm:$0x3]
    %s1304 = scalar_lea.vmem [#allocation13], 1
    %v1305 = vld [vmem:[%s1304] ss:$8 sm:$0x3]
    %s1306 = scalar_lea.vmem [#allocation13], 2
    %v1307 = vld [vmem:[%s1306] ss:$8 sm:$0x3]
    %v1309 = vlaneseq
    %v1310 = vshrl.u32 %v1309, 7
    %v1311 = vsub.s32 0, %v1310
    %v1312 = vrot.slane %v1303, %v1311
    %v1313 = vlaneseq
    %v1314 = vshrl.u32 %v1313, 7
    %v1315 = vsub.s32 1, %v1314
    %v1316 = vrot.slane %v1303, %v1315
    %1319 = vmatprep.subr.mxu0 %v1272
    %1320 = vmatpush1.msra.mxu0 %v1271
    %1321 = vmatprep.subr.mxu0 %v1274
    %1322 = vmatpush1.msra.mxu0 %v1273
    %1323 = vmatprep.subr.mxu0 %v1276
    %1324 = vmatpush1.msra.mxu0 %v1275
    %1325 = vmatprep.subr.mxu0 %v1278
    %1326 = vmatpush1.msra.mxu0 %v1277
    %1327 = vmatprep.subr.mxu0 %v1280
    %1328 = vmatpush1.msra.mxu0 %v1279
    %1329 = vmatprep.subr.mxu0 %v1282
    %1330 = vmatpush1.msra.mxu0 %v1281
    %1331 = vmatprep.subr.mxu0 %v1284
    %1332 = vmatpush1.msra.mxu0 %v1283
    %1333 = vmatprep.subr.mxu0 %v1286
    %1334 = vmatpush1.msra.mxu0 %v1285
    %1335 = vmatprep.subr.mxu0 %v1288
    %1336 = vmatpush1.msra.mxu0 %v1287
    %1337 = vmatprep.subr.mxu0 %v1290
    %1338 = vmatpush1.msra.mxu0 %v1289
    %1339 = vmatprep.subr.mxu0 %v1292
    %1340 = vmatpush1.msra.mxu0 %v1291
    %1341 = vmatprep.subr.mxu0 %v1294
    %1342 = vmatpush1.msra.mxu0 %v1293
    %1343 = vmatprep.subr.mxu0 %v1296
    %1344 = vmatpush1.msra.mxu0 %v1295
    %1345 = vmatprep.subr.mxu0 %v1298
    %1346 = vmatpush1.msra.mxu0 %v1297
    %1347 = vmatprep.subr.mxu0 %v1300
    %1348 = vmatpush1.msra.mxu0 %v1299
    %1349 = vmatprep.subr.mxu0 %v1302
    %1350 = vmatpush1.msra.mxu0 %v1301
    %1351 = vmatprep.subr.mxu0 0.0
    %1352 = vmatpush1.msra.mxu0 0.0
    %1353 = vmatprep.subr.mxu0 0.0
    %1354 = vmatpush1.msra.mxu0 0.0
    %1355 = vmatprep.subr.mxu0 0.0
    %1356 = vmatpush1.msra.mxu0 0.0
    %1357 = vmatprep.subr.mxu0 0.0
    %1358 = vmatpush1.msra.mxu0 0.0
    %1359 = vmatprep.subr.mxu0 0.0
    %1360 = vmatpush1.msra.mxu0 0.0
    %1361 = vmatprep.subr.mxu0 0.0
    %1362 = vmatpush1.msra.mxu0 0.0
    %1363 = vmatprep.subr.mxu0 0.0
    %1364 = vmatpush1.msra.mxu0 0.0
    %1365 = vmatprep.subr.mxu0 0.0
    %1366 = vmatpush1.msra.mxu0 0.0
    %1367 = vmatprep.subr.mxu0 0.0
    %1368 = vmatpush1.msra.mxu0 0.0
    %1369 = vmatprep.subr.mxu0 0.0
    %1370 = vmatpush1.msra.mxu0 0.0
    %1371 = vmatprep.subr.mxu0 0.0
    %1372 = vmatpush1.msra.mxu0 0.0
    %1373 = vmatprep.subr.mxu0 0.0
    %1374 = vmatpush1.msra.mxu0 0.0
    %1375 = vmatprep.subr.mxu0 0.0
    %1376 = vmatpush1.msra.mxu0 0.0
    %1377 = vmatprep.subr.mxu0 0.0
    %1378 = vmatpush1.msra.mxu0 0.0
    %1379 = vmatprep.subr.mxu0 0.0
    %1380 = vmatpush1.msra.mxu0 0.0
    %1381 = vmatprep.subr.mxu0 0.0
    %1382 = vmatpush1.msra.mxu0 0.0
    %1383 = vmatprep.mubr.f32.mxu0 0.0
    %1384 = vmatmul.mubr.f32.gmra.mrb[0].mxu0 %v1254
    %v1385 = vpop.f32.mrb[0].mxu0
    %v1386 = vadd.f32 %v1312, %v1385
    %v1387 = vpop.f32.mrb[0].mxu0
    %v1388 = vadd.f32 %v1316, %v1387
    %1389 = vdwg.mxu0
    %v1390 = vadd.f32 %v1386, %v1388
    %1391 = vadd.xlane.f32.xlu0 %v1390
    %v1392 = vpop.xlane.xlu0 %1391
    %v1393 = vmul.f32 %v1392, %v809
    %v1394 = vsub.f32 %v1386, %v1393
    %v1395 = vsub.f32 %v1388, %v1393
    %v1396 = vmul.f32 %v1394, %v1394
    %v1397 = vmul.f32 %v1395, %v1395
    %v1398 = vadd.f32 %v1396, %v1397
    %1399 = vadd.xlane.f32.xlu0 %v1398
    %v1400 = vpop.xlane.xlu0 %1399
    %v1401 = vmul.f32 %v1400, %v809
    %v1402 = vadd.f32 %v1401, 1e-05
    %v1403 = vrsqrt.pop %v1402
    %v1404 = vmul.f32 %v1394, %v1403
    %v1405 = vmul.f32 %v1395, %v1403
    %v1407 = vlaneseq
    %v1408 = vshrl.u32 %v1407, 7
    %v1409 = vsub.s32 0, %v1408
    %v1410 = vrot.slane %v1305, %v1409
    %v1411 = vlaneseq
    %v1412 = vshrl.u32 %v1411, 7
    %v1413 = vsub.s32 1, %v1412
    %v1414 = vrot.slane %v1305, %v1413
    %v1417 = vmul.f32 %v1404, %v1410
    %v1418 = vmul.f32 %v1405, %v1414
    %v1420 = vlaneseq
    %v1421 = vshrl.u32 %v1420, 7
    %v1422 = vsub.s32 0, %v1421
    %v1423 = vrot.slane %v1307, %v1422
    %v1424 = vlaneseq
    %v1425 = vshrl.u32 %v1424, 7
    %v1426 = vsub.s32 1, %v1425
    %v1427 = vrot.slane %v1307, %v1426
    %v1430 = vadd.f32 %v1417, %v1423
    %v1431 = vadd.f32 %v1418, %v1427
    %vm1432 = vcmp.ge.f32.partialorder %v1430, 0.0
    %vm1433 = vcmp.ge.f32.partialorder %v1431, 0.0
    %v1434 = vmul.f32 %v1430, 0.02
    %v1435 = vmul.f32 %v1431, 0.02
    %v1436 = vsel %vm1432, %v1430, %v1434
    %v1437 = vsel %vm1433, %v1431, %v1435
    %v1438 = vld [vmem:[#allocation14] sm:$0xff]
    %v1439 = vld [vmem:[#allocation14 + $0x8] sm:$0xff]
    %v1440 = vld [vmem:[#allocation14 + $0x10] sm:$0xff]
    %v1441 = vld [vmem:[#allocation14 + $0x18] sm:$0xff]
    %v1442 = vld [vmem:[#allocation14 + $0x20] sm:$0xff]
    %v1443 = vld [vmem:[#allocation14 + $0x28] sm:$0xff]
    %v1444 = vld [vmem:[#allocation14 + $0x30] sm:$0xff]
    %v1445 = vld [vmem:[#allocation14 + $0x38] sm:$0xff]
    %v1446 = vld [vmem:[#allocation14 + $0x40] sm:$0xff]
    %v1447 = vld [vmem:[#allocation14 + $0x48] sm:$0xff]
    %v1448 = vld [vmem:[#allocation14 + $0x50] sm:$0xff]
    %v1449 = vld [vmem:[#allocation14 + $0x58] sm:$0xff]
    %v1450 = vld [vmem:[#allocation14 + $0x60] sm:$0xff]
    %v1451 = vld [vmem:[#allocation14 + $0x68] sm:$0xff]
    %v1452 = vld [vmem:[#allocation14 + $0x70] sm:$0xff]
    %v1453 = vld [vmem:[#allocation14 + $0x78] sm:$0xff]
    %v1454 = vld [vmem:[#allocation14 + $0x80] sm:$0xff]
    %v1455 = vld [vmem:[#allocation14 + $0x88] sm:$0xff]
    %v1456 = vld [vmem:[#allocation14 + $0x90] sm:$0xff]
    %v1457 = vld [vmem:[#allocation14 + $0x98] sm:$0xff]
    %v1458 = vld [vmem:[#allocation14 + $0xa0] sm:$0xff]
    %v1459 = vld [vmem:[#allocation14 + $0xa8] sm:$0xff]
    %v1460 = vld [vmem:[#allocation14 + $0xb0] sm:$0xff]
    %v1461 = vld [vmem:[#allocation14 + $0xb8] sm:$0xff]
    %v1462 = vld [vmem:[#allocation14 + $0xc0] sm:$0xff]
    %v1463 = vld [vmem:[#allocation14 + $0xc8] sm:$0xff]
    %v1464 = vld [vmem:[#allocation14 + $0xd0] sm:$0xff]
    %v1465 = vld [vmem:[#allocation14 + $0xd8] sm:$0xff]
    %v1466 = vld [vmem:[#allocation14 + $0xe0] sm:$0xff]
    %v1467 = vld [vmem:[#allocation14 + $0xe8] sm:$0xff]
    %v1468 = vld [vmem:[#allocation14 + $0xf0] sm:$0xff]
    %v1469 = vld [vmem:[#allocation14 + $0xf8] sm:$0xff]
    %v1470 = vld [vmem:[#allocation14 + $0x100] sm:$0xff]
    %v1471 = vld [vmem:[#allocation14 + $0x108] sm:$0xff]
    %v1472 = vld [vmem:[#allocation14 + $0x110] sm:$0xff]
    %v1473 = vld [vmem:[#allocation14 + $0x118] sm:$0xff]
    %v1474 = vld [vmem:[#allocation14 + $0x120] sm:$0xff]
    %v1475 = vld [vmem:[#allocation14 + $0x128] sm:$0xff]
    %v1476 = vld [vmem:[#allocation14 + $0x130] sm:$0xff]
    %v1477 = vld [vmem:[#allocation14 + $0x138] sm:$0xff]
    %v1478 = vld [vmem:[#allocation14 + $0x140] sm:$0xff]
    %v1479 = vld [vmem:[#allocation14 + $0x148] sm:$0xff]
    %v1480 = vld [vmem:[#allocation14 + $0x150] sm:$0xff]
    %v1481 = vld [vmem:[#allocation14 + $0x158] sm:$0xff]
    %v1482 = vld [vmem:[#allocation14 + $0x160] sm:$0xff]
    %v1483 = vld [vmem:[#allocation14 + $0x168] sm:$0xff]
    %v1484 = vld [vmem:[#allocation14 + $0x170] sm:$0xff]
    %v1485 = vld [vmem:[#allocation14 + $0x178] sm:$0xff]
    %v1486 = vld [vmem:[#allocation14 + $0x180] sm:$0xff]
    %v1487 = vld [vmem:[#allocation14 + $0x188] sm:$0xff]
    %v1488 = vld [vmem:[#allocation14 + $0x190] sm:$0xff]
    %v1489 = vld [vmem:[#allocation14 + $0x198] sm:$0xff]
    %v1490 = vld [vmem:[#allocation14 + $0x1a0] sm:$0xff]
    %v1491 = vld [vmem:[#allocation14 + $0x1a8] sm:$0xff]
    %v1492 = vld [vmem:[#allocation14 + $0x1b0] sm:$0xff]
    %v1493 = vld [vmem:[#allocation14 + $0x1b8] sm:$0xff]
    %v1494 = vld [vmem:[#allocation14 + $0x1c0] sm:$0xff]
    %v1495 = vld [vmem:[#allocation14 + $0x1c8] sm:$0xff]
    %v1496 = vld [vmem:[#allocation14 + $0x1d0] sm:$0xff]
    %v1497 = vld [vmem:[#allocation14 + $0x1d8] sm:$0xff]
    %v1498 = vld [vmem:[#allocation14 + $0x1e0] sm:$0xff]
    %v1499 = vld [vmem:[#allocation14 + $0x1e8] sm:$0xff]
    %v1500 = vld [vmem:[#allocation14 + $0x1f0] sm:$0xff]
    %v1501 = vld [vmem:[#allocation14 + $0x1f8] sm:$0xff]
    %v1502 = vunpack.c.l.bf16 %v1438
    %v1503 = vunpack.c.h.bf16 %v1438
    %v1504 = vunpack.c.l.bf16 %v1439
    %v1505 = vunpack.c.h.bf16 %v1439
    %v1506 = vunpack.c.l.bf16 %v1440
    %v1507 = vunpack.c.h.bf16 %v1440
    %v1508 = vunpack.c.l.bf16 %v1441
    %v1509 = vunpack.c.h.bf16 %v1441
    %v1510 = vunpack.c.l.bf16 %v1442
    %v1511 = vunpack.c.h.bf16 %v1442
    %v1512 = vunpack.c.l.bf16 %v1443
    %v1513 = vunpack.c.h.bf16 %v1443
    %v1514 = vunpack.c.l.bf16 %v1444
    %v1515 = vunpack.c.h.bf16 %v1444
    %v1516 = vunpack.c.l.bf16 %v1445
    %v1517 = vunpack.c.h.bf16 %v1445
    %v1518 = vunpack.c.l.bf16 %v1446
    %v1519 = vunpack.c.h.bf16 %v1446
    %v1520 = vunpack.c.l.bf16 %v1447
    %v1521 = vunpack.c.h.bf16 %v1447
    %v1522 = vunpack.c.l.bf16 %v1448
    %v1523 = vunpack.c.h.bf16 %v1448
    %v1524 = vunpack.c.l.bf16 %v1449
    %v1525 = vunpack.c.h.bf16 %v1449
    %v1526 = vunpack.c.l.bf16 %v1450
    %v1527 = vunpack.c.h.bf16 %v1450
    %v1528 = vunpack.c.l.bf16 %v1451
    %v1529 = vunpack.c.h.bf16 %v1451
    %v1530 = vunpack.c.l.bf16 %v1452
    %v1531 = vunpack.c.h.bf16 %v1452
    %v1532 = vunpack.c.l.bf16 %v1453
    %v1533 = vunpack.c.h.bf16 %v1453
    %v1534 = vunpack.c.l.bf16 %v1454
    %v1535 = vunpack.c.h.bf16 %v1454
    %v1536 = vunpack.c.l.bf16 %v1455
    %v1537 = vunpack.c.h.bf16 %v1455
    %v1538 = vunpack.c.l.bf16 %v1456
    %v1539 = vunpack.c.h.bf16 %v1456
    %v1540 = vunpack.c.l.bf16 %v1457
    %v1541 = vunpack.c.h.bf16 %v1457
    %v1542 = vunpack.c.l.bf16 %v1458
    %v1543 = vunpack.c.h.bf16 %v1458
    %v1544 = vunpack.c.l.bf16 %v1459
    %v1545 = vunpack.c.h.bf16 %v1459
    %v1546 = vunpack.c.l.bf16 %v1460
    %v1547 = vunpack.c.h.bf16 %v1460
    %v1548 = vunpack.c.l.bf16 %v1461
    %v1549 = vunpack.c.h.bf16 %v1461
    %v1550 = vunpack.c.l.bf16 %v1462
    %v1551 = vunpack.c.h.bf16 %v1462
    %v1552 = vunpack.c.l.bf16 %v1463
    %v1553 = vunpack.c.h.bf16 %v1463
    %v1554 = vunpack.c.l.bf16 %v1464
    %v1555 = vunpack.c.h.bf16 %v1464
    %v1556 = vunpack.c.l.bf16 %v1465
    %v1557 = vunpack.c.h.bf16 %v1465
    %v1558 = vunpack.c.l.bf16 %v1466
    %v1559 = vunpack.c.h.bf16 %v1466
    %v1560 = vunpack.c.l.bf16 %v1467
    %v1561 = vunpack.c.h.bf16 %v1467
    %v1562 = vunpack.c.l.bf16 %v1468
    %v1563 = vunpack.c.h.bf16 %v1468
    %v1564 = vunpack.c.l.bf16 %v1469
    %v1565 = vunpack.c.h.bf16 %v1469
    %v1566 = vunpack.c.l.bf16 %v1470
    %v1567 = vunpack.c.h.bf16 %v1470
    %v1568 = vunpack.c.l.bf16 %v1471
    %v1569 = vunpack.c.h.bf16 %v1471
    %v1570 = vunpack.c.l.bf16 %v1472
    %v1571 = vunpack.c.h.bf16 %v1472
    %v1572 = vunpack.c.l.bf16 %v1473
    %v1573 = vunpack.c.h.bf16 %v1473
    %v1574 = vunpack.c.l.bf16 %v1474
    %v1575 = vunpack.c.h.bf16 %v1474
    %v1576 = vunpack.c.l.bf16 %v1475
    %v1577 = vunpack.c.h.bf16 %v1475
    %v1578 = vunpack.c.l.bf16 %v1476
    %v1579 = vunpack.c.h.bf16 %v1476
    %v1580 = vunpack.c.l.bf16 %v1477
    %v1581 = vunpack.c.h.bf16 %v1477
    %v1582 = vunpack.c.l.bf16 %v1478
    %v1583 = vunpack.c.h.bf16 %v1478
    %v1584 = vunpack.c.l.bf16 %v1479
    %v1585 = vunpack.c.h.bf16 %v1479
    %v1586 = vunpack.c.l.bf16 %v1480
    %v1587 = vunpack.c.h.bf16 %v1480
    %v1588 = vunpack.c.l.bf16 %v1481
    %v1589 = vunpack.c.h.bf16 %v1481
    %v1590 = vunpack.c.l.bf16 %v1482
    %v1591 = vunpack.c.h.bf16 %v1482
    %v1592 = vunpack.c.l.bf16 %v1483
    %v1593 = vunpack.c.h.bf16 %v1483
    %v1594 = vunpack.c.l.bf16 %v1484
    %v1595 = vunpack.c.h.bf16 %v1484
    %v1596 = vunpack.c.l.bf16 %v1485
    %v1597 = vunpack.c.h.bf16 %v1485
    %v1598 = vunpack.c.l.bf16 %v1486
    %v1599 = vunpack.c.h.bf16 %v1486
    %v1600 = vunpack.c.l.bf16 %v1487
    %v1601 = vunpack.c.h.bf16 %v1487
    %v1602 = vunpack.c.l.bf16 %v1488
    %v1603 = vunpack.c.h.bf16 %v1488
    %v1604 = vunpack.c.l.bf16 %v1489
    %v1605 = vunpack.c.h.bf16 %v1489
    %v1606 = vunpack.c.l.bf16 %v1490
    %v1607 = vunpack.c.h.bf16 %v1490
    %v1608 = vunpack.c.l.bf16 %v1491
    %v1609 = vunpack.c.h.bf16 %v1491
    %v1610 = vunpack.c.l.bf16 %v1492
    %v1611 = vunpack.c.h.bf16 %v1492
    %v1612 = vunpack.c.l.bf16 %v1493
    %v1613 = vunpack.c.h.bf16 %v1493
    %v1614 = vunpack.c.l.bf16 %v1494
    %v1615 = vunpack.c.h.bf16 %v1494
    %v1616 = vunpack.c.l.bf16 %v1495
    %v1617 = vunpack.c.h.bf16 %v1495
    %v1618 = vunpack.c.l.bf16 %v1496
    %v1619 = vunpack.c.h.bf16 %v1496
    %v1620 = vunpack.c.l.bf16 %v1497
    %v1621 = vunpack.c.h.bf16 %v1497
    %v1622 = vunpack.c.l.bf16 %v1498
    %v1623 = vunpack.c.h.bf16 %v1498
    %v1624 = vunpack.c.l.bf16 %v1499
    %v1625 = vunpack.c.h.bf16 %v1499
    %v1626 = vunpack.c.l.bf16 %v1500
    %v1627 = vunpack.c.h.bf16 %v1500
    %v1628 = vunpack.c.l.bf16 %v1501
    %v1629 = vunpack.c.h.bf16 %v1501
    %v1630 = vld [vmem:[%s15] ss:$8 sm:$0xf]
    %s1631 = scalar_lea.vmem %s15, 1
    %v1632 = vld [vmem:[%s1631] ss:$8 sm:$0xf]
    %s1633 = scalar_lea.vmem %s15, 2
    %v1634 = vld [vmem:[%s1633] ss:$8 sm:$0xf]
    %v1636 = vlaneseq
    %v1637 = vshrl.u32 %v1636, 7
    %v1638 = vsub.s32 0, %v1637
    %v1639 = vrot.slane %v1630, %v1638
    %v1640 = vlaneseq
    %v1641 = vshrl.u32 %v1640, 7
    %v1642 = vsub.s32 1, %v1641
    %v1643 = vrot.slane %v1630, %v1642
    %v1644 = vlaneseq
    %v1645 = vshrl.u32 %v1644, 7
    %v1646 = vsub.s32 2, %v1645
    %v1647 = vrot.slane %v1630, %v1646
    %v1648 = vlaneseq
    %v1649 = vshrl.u32 %v1648, 7
    %v1650 = vsub.s32 3, %v1649
    %v1651 = vrot.slane %v1630, %v1650
    %1656 = vmatprep.subr.mxu0 %v1503
    %1657 = vmatpush1.msra.mxu0 %v1502
    %1658 = vmatprep.subr.mxu0 %v1507
    %1659 = vmatpush1.msra.mxu0 %v1506
    %1660 = vmatprep.subr.mxu0 %v1511
    %1661 = vmatpush1.msra.mxu0 %v1510
    %1662 = vmatprep.subr.mxu0 %v1515
    %1663 = vmatpush1.msra.mxu0 %v1514
    %1664 = vmatprep.subr.mxu0 %v1519
    %1665 = vmatpush1.msra.mxu0 %v1518
    %1666 = vmatprep.subr.mxu0 %v1523
    %1667 = vmatpush1.msra.mxu0 %v1522
    %1668 = vmatprep.subr.mxu0 %v1527
    %1669 = vmatpush1.msra.mxu0 %v1526
    %1670 = vmatprep.subr.mxu0 %v1531
    %1671 = vmatpush1.msra.mxu0 %v1530
    %1672 = vmatprep.subr.mxu0 %v1535
    %1673 = vmatpush1.msra.mxu0 %v1534
    %1674 = vmatprep.subr.mxu0 %v1539
    %1675 = vmatpush1.msra.mxu0 %v1538
    %1676 = vmatprep.subr.mxu0 %v1543
    %1677 = vmatpush1.msra.mxu0 %v1542
    %1678 = vmatprep.subr.mxu0 %v1547
    %1679 = vmatpush1.msra.mxu0 %v1546
    %1680 = vmatprep.subr.mxu0 %v1551
    %1681 = vmatpush1.msra.mxu0 %v1550
    %1682 = vmatprep.subr.mxu0 %v1555
    %1683 = vmatpush1.msra.mxu0 %v1554
    %1684 = vmatprep.subr.mxu0 %v1559
    %1685 = vmatpush1.msra.mxu0 %v1558
    %1686 = vmatprep.subr.mxu0 %v1563
    %1687 = vmatpush1.msra.mxu0 %v1562
    %1688 = vmatprep.subr.mxu0 %v1567
    %1689 = vmatpush1.msra.mxu0 %v1566
    %1690 = vmatprep.subr.mxu0 %v1571
    %1691 = vmatpush1.msra.mxu0 %v1570
    %1692 = vmatprep.subr.mxu0 %v1575
    %1693 = vmatpush1.msra.mxu0 %v1574
    %1694 = vmatprep.subr.mxu0 %v1579
    %1695 = vmatpush1.msra.mxu0 %v1578
    %1696 = vmatprep.subr.mxu0 %v1583
    %1697 = vmatpush1.msra.mxu0 %v1582
    %1698 = vmatprep.subr.mxu0 %v1587
    %1699 = vmatpush1.msra.mxu0 %v1586
    %1700 = vmatprep.subr.mxu0 %v1591
    %1701 = vmatpush1.msra.mxu0 %v1590
    %1702 = vmatprep.subr.mxu0 %v1595
    %1703 = vmatpush1.msra.mxu0 %v1594
    %1704 = vmatprep.subr.mxu0 %v1599
    %1705 = vmatpush1.msra.mxu0 %v1598
    %1706 = vmatprep.subr.mxu0 %v1603
    %1707 = vmatpush1.msra.mxu0 %v1602
    %1708 = vmatprep.subr.mxu0 %v1607
    %1709 = vmatpush1.msra.mxu0 %v1606
    %1710 = vmatprep.subr.mxu0 %v1611
    %1711 = vmatpush1.msra.mxu0 %v1610
    %1712 = vmatprep.subr.mxu0 %v1615
    %1713 = vmatpush1.msra.mxu0 %v1614
    %1714 = vmatprep.subr.mxu0 %v1619
    %1715 = vmatpush1.msra.mxu0 %v1618
    %1716 = vmatprep.subr.mxu0 %v1623
    %1717 = vmatpush1.msra.mxu0 %v1622
    %1718 = vmatprep.subr.mxu0 %v1627
    %1719 = vmatpush1.msra.mxu0 %v1626
    %1720 = vmatprep.mubr.f32.mxu0 %v1437
    %1721 = vmatmul.mubr.f32.gmra.mrb[0].mxu0 %v1436
    %v1722 = vpop.f32.mrb[0].mxu0
    %v1723 = vadd.f32 %v1639, %v1722
    %v1724 = vpop.f32.mrb[0].mxu0
    %v1725 = vadd.f32 %v1643, %v1724
    %1726 = vdwg.mxu0
    %1727 = vmatprep.subr.mxu0 %v1505
    %1728 = vmatpush1.msra.mxu0 %v1504
    %1729 = vmatprep.subr.mxu0 %v1509
    %1730 = vmatpush1.msra.mxu0 %v1508
    %1731 = vmatprep.subr.mxu0 %v1513
    %1732 = vmatpush1.msra.mxu0 %v1512
    %1733 = vmatprep.subr.mxu0 %v1517
    %1734 = vmatpush1.msra.mxu0 %v1516
    %1735 = vmatprep.subr.mxu0 %v1521
    %1736 = vmatpush1.msra.mxu0 %v1520
    %1737 = vmatprep.subr.mxu0 %v1525
    %1738 = vmatpush1.msra.mxu0 %v1524
    %1739 = vmatprep.subr.mxu0 %v1529
    %1740 = vmatpush1.msra.mxu0 %v1528
    %1741 = vmatprep.subr.mxu0 %v1533
    %1742 = vmatpush1.msra.mxu0 %v1532
    %1743 = vmatprep.subr.mxu0 %v1537
    %1744 = vmatpush1.msra.mxu0 %v1536
    %1745 = vmatprep.subr.mxu0 %v1541
    %1746 = vmatpush1.msra.mxu0 %v1540
    %1747 = vmatprep.subr.mxu0 %v1545
    %1748 = vmatpush1.msra.mxu0 %v1544
    %1749 = vmatprep.subr.mxu0 %v1549
    %1750 = vmatpush1.msra.mxu0 %v1548
    %1751 = vmatprep.subr.mxu0 %v1553
    %1752 = vmatpush1.msra.mxu0 %v1552
    %1753 = vmatprep.subr.mxu0 %v1557
    %1754 = vmatpush1.msra.mxu0 %v1556
    %1755 = vmatprep.subr.mxu0 %v1561
    %1756 = vmatpush1.msra.mxu0 %v1560
    %1757 = vmatprep.subr.mxu0 %v1565
    %1758 = vmatpush1.msra.mxu0 %v1564
    %1759 = vmatprep.subr.mxu0 %v1569
    %1760 = vmatpush1.msra.mxu0 %v1568
    %1761 = vmatprep.subr.mxu0 %v1573
    %1762 = vmatpush1.msra.mxu0 %v1572
    %1763 = vmatprep.subr.mxu0 %v1577
    %1764 = vmatpush1.msra.mxu0 %v1576
    %1765 = vmatprep.subr.mxu0 %v1581
    %1766 = vmatpush1.msra.mxu0 %v1580
    %1767 = vmatprep.subr.mxu0 %v1585
    %1768 = vmatpush1.msra.mxu0 %v1584
    %1769 = vmatprep.subr.mxu0 %v1589
    %1770 = vmatpush1.msra.mxu0 %v1588
    %1771 = vmatprep.subr.mxu0 %v1593
    %1772 = vmatpush1.msra.mxu0 %v1592
    %1773 = vmatprep.subr.mxu0 %v1597
    %1774 = vmatpush1.msra.mxu0 %v1596
    %1775 = vmatprep.subr.mxu0 %v1601
    %1776 = vmatpush1.msra.mxu0 %v1600
    %1777 = vmatprep.subr.mxu0 %v1605
    %1778 = vmatpush1.msra.mxu0 %v1604
    %1779 = vmatprep.subr.mxu0 %v1609
    %1780 = vmatpush1.msra.mxu0 %v1608
    %1781 = vmatprep.subr.mxu0 %v1613
    %1782 = vmatpush1.msra.mxu0 %v1612
    %1783 = vmatprep.subr.mxu0 %v1617
    %1784 = vmatpush1.msra.mxu0 %v1616
    %1785 = vmatprep.subr.mxu0 %v1621
    %1786 = vmatpush1.msra.mxu0 %v1620
    %1787 = vmatprep.subr.mxu0 %v1625
    %1788 = vmatpush1.msra.mxu0 %v1624
    %1789 = vmatprep.subr.mxu0 %v1629
    %1790 = vmatpush1.msra.mxu0 %v1628
    %1791 = vmatprep.mubr.f32.mxu0 %v1437
    %1792 = vmatmul.mubr.f32.gmra.mrb[0].mxu0 %v1436
    %v1793 = vpop.f32.mrb[0].mxu0
    %v1794 = vadd.f32 %v1647, %v1793
    %v1795 = vpop.f32.mrb[0].mxu0
    %v1796 = vadd.f32 %v1651, %v1795
    %1797 = vdwg.mxu0
    %v1798 = vadd.f32 %v1723, %v1725
    %v1799 = vadd.f32 %v1798, %v1794
    %v1800 = vadd.f32 %v1799, %v1796
    %1801 = vadd.xlane.f32.xlu0 %v1800
    %v1802 = vpop.xlane.xlu0 %1801
    %v1803 = vmul.f32 %v1802, %v372
    %v1804 = vsub.f32 %v1723, %v1803
    %v1805 = vsub.f32 %v1725, %v1803
    %v1806 = vsub.f32 %v1794, %v1803
    %v1807 = vsub.f32 %v1796, %v1803
    %v1808 = vmul.f32 %v1804, %v1804
    %v1809 = vmul.f32 %v1805, %v1805
    %v1810 = vmul.f32 %v1806, %v1806
    %v1811 = vmul.f32 %v1807, %v1807
    %v1812 = vadd.f32 %v1808, %v1809
    %v1813 = vadd.f32 %v1812, %v1810
    %v1814 = vadd.f32 %v1813, %v1811
    %1815 = vadd.xlane.f32.xlu0 %v1814
    %v1816 = vpop.xlane.xlu0 %1815
    %v1817 = vmul.f32 %v1816, %v372
    %v1818 = vadd.f32 %v1817, 1e-05
    %v1819 = vrsqrt.pop %v1818
    %v1820 = vmul.f32 %v1804, %v1819
    %v1821 = vmul.f32 %v1805, %v1819
    %v1822 = vmul.f32 %v1806, %v1819
    %v1823 = vmul.f32 %v1807, %v1819
    %v1825 = vlaneseq
    %v1826 = vshrl.u32 %v1825, 7
    %v1827 = vsub.s32 0, %v1826
    %v1828 = vrot.slane %v1632, %v1827
    %v1829 = vlaneseq
    %v1830 = vshrl.u32 %v1829, 7
    %v1831 = vsub.s32 1, %v1830
    %v1832 = vrot.slane %v1632, %v1831
    %v1833 = vlaneseq
    %v1834 = vshrl.u32 %v1833, 7
    %v1835 = vsub.s32 2, %v1834
    %v1836 = vrot.slane %v1632, %v1835
    %v1837 = vlaneseq
    %v1838 = vshrl.u32 %v1837, 7
    %v1839 = vsub.s32 3, %v1838
    %v1840 = vrot.slane %v1632, %v1839
    %v1845 = vmul.f32 %v1820, %v1828
    %v1846 = vmul.f32 %v1821, %v1832
    %v1847 = vmul.f32 %v1822, %v1836
    %v1848 = vmul.f32 %v1823, %v1840
    %v1850 = vlaneseq
    %v1851 = vshrl.u32 %v1850, 7
    %v1852 = vsub.s32 0, %v1851
    %v1853 = vrot.slane %v1634, %v1852
    %v1854 = vlaneseq
    %v1855 = vshrl.u32 %v1854, 7
    %v1856 = vsub.s32 1, %v1855
    %v1857 = vrot.slane %v1634, %v1856
    %v1858 = vlaneseq
    %v1859 = vshrl.u32 %v1858, 7
    %v1860 = vsub.s32 2, %v1859
    %v1861 = vrot.slane %v1634, %v1860
    %v1862 = vlaneseq
    %v1863 = vshrl.u32 %v1862, 7
    %v1864 = vsub.s32 3, %v1863
    %v1865 = vrot.slane %v1634, %v1864
    %v1870 = vadd.f32 %v1845, %v1853
    %v1871 = vadd.f32 %v1846, %v1857
    %v1872 = vadd.f32 %v1847, %v1861
    %v1873 = vadd.f32 %v1848, %v1865
    %vm1874 = vcmp.ge.f32.partialorder %v1870, 0.0
    %vm1875 = vcmp.ge.f32.partialorder %v1871, 0.0
    %vm1876 = vcmp.ge.f32.partialorder %v1872, 0.0
    %vm1877 = vcmp.ge.f32.partialorder %v1873, 0.0
    %v1878 = vmul.f32 %v1870, 0.02
    %v1879 = vmul.f32 %v1871, 0.02
    %v1880 = vmul.f32 %v1872, 0.02
    %v1881 = vmul.f32 %v1873, 0.02
    %v1882 = vsel %vm1874, %v1870, %v1878
    %v1883 = vsel %vm1875, %v1871, %v1879
    %v1884 = vsel %vm1876, %v1872, %v1880
    %v1885 = vsel %vm1877, %v1873, %v1881
    %v1886 = vld [vmem:[%s16] sm:$0xf]
    %v1887 = vld [vmem:[%s16 + $0x4] sm:$0xf]
    %v1888 = vld [vmem:[%s16 + $0x8] sm:$0xf]
    %v1889 = vld [vmem:[%s16 + $0xc] sm:$0xf]
    %v1890 = vld [vmem:[%s16 + $0x10] sm:$0xf]
    %v1891 = vld [vmem:[%s16 + $0x14] sm:$0xf]
    %v1892 = vld [vmem:[%s16 + $0x18] sm:$0xf]
    %v1893 = vld [vmem:[%s16 + $0x1c] sm:$0xf]
    %v1894 = vld [vmem:[%s16 + $0x20] sm:$0xf]
    %v1895 = vld [vmem:[%s16 + $0x24] sm:$0xf]
    %v1896 = vld [vmem:[%s16 + $0x28] sm:$0xf]
    %v1897 = vld [vmem:[%s16 + $0x2c] sm:$0xf]
    %v1898 = vld [vmem:[%s16 + $0x30] sm:$0xf]
    %v1899 = vld [vmem:[%s16 + $0x34] sm:$0xf]
    %v1900 = vld [vmem:[%s16 + $0x38] sm:$0xf]
    %v1901 = vld [vmem:[%s16 + $0x3c] sm:$0xf]
    %v1902 = vld [vmem:[%s16 + $0x40] sm:$0xf]
    %v1903 = vld [vmem:[%s16 + $0x44] sm:$0xf]
    %v1904 = vld [vmem:[%s16 + $0x48] sm:$0xf]
    %v1905 = vld [vmem:[%s16 + $0x4c] sm:$0xf]
    %v1906 = vld [vmem:[%s16 + $0x50] sm:$0xf]
    %v1907 = vld [vmem:[%s16 + $0x54] sm:$0xf]
    %v1908 = vld [vmem:[%s16 + $0x58] sm:$0xf]
    %v1909 = vld [vmem:[%s16 + $0x5c] sm:$0xf]
    %v1910 = vld [vmem:[%s16 + $0x60] sm:$0xf]
    %v1911 = vld [vmem:[%s16 + $0x64] sm:$0xf]
    %v1912 = vld [vmem:[%s16 + $0x68] sm:$0xf]
    %v1913 = vld [vmem:[%s16 + $0x6c] sm:$0xf]
    %v1914 = vld [vmem:[%s16 + $0x70] sm:$0xf]
    %v1915 = vld [vmem:[%s16 + $0x74] sm:$0xf]
    %v1916 = vld [vmem:[%s16 + $0x78] sm:$0xf]
    %v1917 = vld [vmem:[%s16 + $0x7c] sm:$0xf]
    %v1918 = vld [vmem:[%s16 + $0x80] sm:$0xf]
    %v1919 = vld [vmem:[%s16 + $0x84] sm:$0xf]
    %v1920 = vld [vmem:[%s16 + $0x88] sm:$0xf]
    %v1921 = vld [vmem:[%s16 + $0x8c] sm:$0xf]
    %v1922 = vld [vmem:[%s16 + $0x90] sm:$0xf]
    %v1923 = vld [vmem:[%s16 + $0x94] sm:$0xf]
    %v1924 = vld [vmem:[%s16 + $0x98] sm:$0xf]
    %v1925 = vld [vmem:[%s16 + $0x9c] sm:$0xf]
    %v1926 = vld [vmem:[%s16 + $0xa0] sm:$0xf]
    %v1927 = vld [vmem:[%s16 + $0xa4] sm:$0xf]
    %v1928 = vld [vmem:[%s16 + $0xa8] sm:$0xf]
    %v1929 = vld [vmem:[%s16 + $0xac] sm:$0xf]
    %v1930 = vld [vmem:[%s16 + $0xb0] sm:$0xf]
    %v1931 = vld [vmem:[%s16 + $0xb4] sm:$0xf]
    %v1932 = vld [vmem:[%s16 + $0xb8] sm:$0xf]
    %v1933 = vld [vmem:[%s16 + $0xbc] sm:$0xf]
    %v1934 = vld [vmem:[%s16 + $0xc0] sm:$0xf]
    %v1935 = vld [vmem:[%s16 + $0xc4] sm:$0xf]
    %v1936 = vld [vmem:[%s16 + $0xc8] sm:$0xf]
    %v1937 = vld [vmem:[%s16 + $0xcc] sm:$0xf]
    %v1938 = vld [vmem:[%s16 + $0xd0] sm:$0xf]
    %v1939 = vld [vmem:[%s16 + $0xd4] sm:$0xf]
    %v1940 = vld [vmem:[%s16 + $0xd8] sm:$0xf]
    %v1941 = vld [vmem:[%s16 + $0xdc] sm:$0xf]
    %v1942 = vld [vmem:[%s16 + $0xe0] sm:$0xf]
    %v1943 = vld [vmem:[%s16 + $0xe4] sm:$0xf]
    %v1944 = vld [vmem:[%s16 + $0xe8] sm:$0xf]
    %v1945 = vld [vmem:[%s16 + $0xec] sm:$0xf]
    %v1946 = vld [vmem:[%s16 + $0xf0] sm:$0xf]
    %v1947 = vld [vmem:[%s16 + $0xf4] sm:$0xf]
    %v1948 = vld [vmem:[%s16 + $0xf8] sm:$0xf]
    %v1949 = vld [vmem:[%s16 + $0xfc] sm:$0xf]
    %v1950 = vunpack.c.l.bf16 %v1886
    %v1951 = vunpack.c.l.bf16 %v1887
    %v1952 = vunpack.c.l.bf16 %v1888
    %v1953 = vunpack.c.l.bf16 %v1889
    %v1954 = vunpack.c.l.bf16 %v1890
    %v1955 = vunpack.c.l.bf16 %v1891
    %v1956 = vunpack.c.l.bf16 %v1892
    %v1957 = vunpack.c.l.bf16 %v1893
    %v1958 = vunpack.c.l.bf16 %v1894
    %v1959 = vunpack.c.l.bf16 %v1895
    %v1960 = vunpack.c.l.bf16 %v1896
    %v1961 = vunpack.c.l.bf16 %v1897
    %v1962 = vunpack.c.l.bf16 %v1898
    %v1963 = vunpack.c.l.bf16 %v1899
    %v1964 = vunpack.c.l.bf16 %v1900
    %v1965 = vunpack.c.l.bf16 %v1901
    %v1966 = vunpack.c.l.bf16 %v1902
    %v1967 = vunpack.c.l.bf16 %v1903
    %v1968 = vunpack.c.l.bf16 %v1904
    %v1969 = vunpack.c.l.bf16 %v1905
    %v1970 = vunpack.c.l.bf16 %v1906
    %v1971 = vunpack.c.l.bf16 %v1907
    %v1972 = vunpack.c.l.bf16 %v1908
    %v1973 = vunpack.c.l.bf16 %v1909
    %v1974 = vunpack.c.l.bf16 %v1910
    %v1975 = vunpack.c.l.bf16 %v1911
    %v1976 = vunpack.c.l.bf16 %v1912
    %v1977 = vunpack.c.l.bf16 %v1913
    %v1978 = vunpack.c.l.bf16 %v1914
    %v1979 = vunpack.c.l.bf16 %v1915
    %v1980 = vunpack.c.l.bf16 %v1916
    %v1981 = vunpack.c.l.bf16 %v1917
    %v1982 = vunpack.c.l.bf16 %v1918
    %v1983 = vunpack.c.l.bf16 %v1919
    %v1984 = vunpack.c.l.bf16 %v1920
    %v1985 = vunpack.c.l.bf16 %v1921
    %v1986 = vunpack.c.l.bf16 %v1922
    %v1987 = vunpack.c.l.bf16 %v1923
    %v1988 = vunpack.c.l.bf16 %v1924
    %v1989 = vunpack.c.l.bf16 %v1925
    %v1990 = vunpack.c.l.bf16 %v1926
    %v1991 = vunpack.c.l.bf16 %v1927
    %v1992 = vunpack.c.l.bf16 %v1928
    %v1993 = vunpack.c.l.bf16 %v1929
    %v1994 = vunpack.c.l.bf16 %v1930
    %v1995 = vunpack.c.l.bf16 %v1931
    %v1996 = vunpack.c.l.bf16 %v1932
    %v1997 = vunpack.c.l.bf16 %v1933
    %v1998 = vunpack.c.l.bf16 %v1934
    %v1999 = vunpack.c.l.bf16 %v1935
    %v2000 = vunpack.c.l.bf16 %v1936
    %v2001 = vunpack.c.l.bf16 %v1937
    %v2002 = vunpack.c.l.bf16 %v1938
    %v2003 = vunpack.c.l.bf16 %v1939
    %v2004 = vunpack.c.l.bf16 %v1940
    %v2005 = vunpack.c.l.bf16 %v1941
    %v2006 = vunpack.c.l.bf16 %v1942
    %v2007 = vunpack.c.l.bf16 %v1943
    %v2008 = vunpack.c.l.bf16 %v1944
    %v2009 = vunpack.c.l.bf16 %v1945
    %v2010 = vunpack.c.l.bf16 %v1946
    %v2011 = vunpack.c.l.bf16 %v1947
    %v2012 = vunpack.c.l.bf16 %v1948
    %v2013 = vunpack.c.l.bf16 %v1949
    %v2014 = vld [vmem:[#allocation16] sm:$0x1]
    %v2016 = vlaneseq
    %v2017 = vshrl.u32 %v2016, 7
    %v2018 = vsub.s32 0, %v2017
    %v2019 = vrot.slane %v2014, %v2018
    %2021 = vmatprep.subr.mxu0 0.0
    %2022 = vmatpush1.msra.mxu0 %v1950
    %2023 = vmatprep.subr.mxu0 0.0
    %2024 = vmatpush1.msra.mxu0 %v1951
    %2025 = vmatprep.subr.mxu0 0.0
    %2026 = vmatpush1.msra.mxu0 %v1952
    %2027 = vmatprep.subr.mxu0 0.0
    %2028 = vmatpush1.msra.mxu0 %v1953
    %2029 = vmatprep.subr.mxu0 0.0
    %2030 = vmatpush1.msra.mxu0 %v1954
    %2031 = vmatprep.subr.mxu0 0.0
    %2032 = vmatpush1.msra.mxu0 %v1955
    %2033 = vmatprep.subr.mxu0 0.0
    %2034 = vmatpush1.msra.mxu0 %v1956
    %2035 = vmatprep.subr.mxu0 0.0
    %2036 = vmatpush1.msra.mxu0 %v1957
    %2037 = vmatprep.subr.mxu0 0.0
    %2038 = vmatpush1.msra.mxu0 %v1958
    %2039 = vmatprep.subr.mxu0 0.0
    %2040 = vmatpush1.msra.mxu0 %v1959
    %2041 = vmatprep.subr.mxu0 0.0
    %2042 = vmatpush1.msra.mxu0 %v1960
    %2043 = vmatprep.subr.mxu0 0.0
    %2044 = vmatpush1.msra.mxu0 %v1961
    %2045 = vmatprep.subr.mxu0 0.0
    %2046 = vmatpush1.msra.mxu0 %v1962
    %2047 = vmatprep.subr.mxu0 0.0
    %2048 = vmatpush1.msra.mxu0 %v1963
    %2049 = vmatprep.subr.mxu0 0.0
    %2050 = vmatpush1.msra.mxu0 %v1964
    %2051 = vmatprep.subr.mxu0 0.0
    %2052 = vmatpush1.msra.mxu0 %v1965
    %2053 = vmatprep.subr.mxu0 0.0
    %2054 = vmatpush1.msra.mxu0 %v1966
    %2055 = vmatprep.subr.mxu0 0.0
    %2056 = vmatpush1.msra.mxu0 %v1967
    %2057 = vmatprep.subr.mxu0 0.0
    %2058 = vmatpush1.msra.mxu0 %v1968
    %2059 = vmatprep.subr.mxu0 0.0
    %2060 = vmatpush1.msra.mxu0 %v1969
    %2061 = vmatprep.subr.mxu0 0.0
    %2062 = vmatpush1.msra.mxu0 %v1970
    %2063 = vmatprep.subr.mxu0 0.0
    %2064 = vmatpush1.msra.mxu0 %v1971
    %2065 = vmatprep.subr.mxu0 0.0
    %2066 = vmatpush1.msra.mxu0 %v1972
    %2067 = vmatprep.subr.mxu0 0.0
    %2068 = vmatpush1.msra.mxu0 %v1973
    %2069 = vmatprep.subr.mxu0 0.0
    %2070 = vmatpush1.msra.mxu0 %v1974
    %2071 = vmatprep.subr.mxu0 0.0
    %2072 = vmatpush1.msra.mxu0 %v1975
    %2073 = vmatprep.subr.mxu0 0.0
    %2074 = vmatpush1.msra.mxu0 %v1976
    %2075 = vmatprep.subr.mxu0 0.0
    %2076 = vmatpush1.msra.mxu0 %v1977
    %2077 = vmatprep.subr.mxu0 0.0
    %2078 = vmatpush1.msra.mxu0 %v1978
    %2079 = vmatprep.subr.mxu0 0.0
    %2080 = vmatpush1.msra.mxu0 %v1979
    %2081 = vmatprep.subr.mxu0 0.0
    %2082 = vmatpush1.msra.mxu0 %v1980
    %2083 = vmatprep.subr.mxu0 0.0
    %2084 = vmatpush1.msra.mxu0 %v1981
    %2085 = vmatprep.mubr.f32.mxu0 %v1883
    %2086 = vmatmul.mubr.f32.gmra.mrb[0].mxu0 %v1882
    %v2087 = vpop.f32.mrb[0].mxu0
    %v2088 = vadd.f32 %v2019, %v2087
    %v2089 = vpop.f32.mrb[0].mxu0
    %2090 = vdwg.mxu0
    %2091 = vmatprep.subr.mxu0 0.0
    %2092 = vmatpush1.msra.mxu0 %v1982
    %2093 = vmatprep.subr.mxu0 0.0
    %2094 = vmatpush1.msra.mxu0 %v1983
    %2095 = vmatprep.subr.mxu0 0.0
    %2096 = vmatpush1.msra.mxu0 %v1984
    %2097 = vmatprep.subr.mxu0 0.0
    %2098 = vmatpush1.msra.mxu0 %v1985
    %2099 = vmatprep.subr.mxu0 0.0
    %2100 = vmatpush1.msra.mxu0 %v1986
    %2101 = vmatprep.subr.mxu0 0.0
    %2102 = vmatpush1.msra.mxu0 %v1987
    %2103 = vmatprep.subr.mxu0 0.0
    %2104 = vmatpush1.msra.mxu0 %v1988
    %2105 = vmatprep.subr.mxu0 0.0
    %2106 = vmatpush1.msra.mxu0 %v1989
    %2107 = vmatprep.subr.mxu0 0.0
    %2108 = vmatpush1.msra.mxu0 %v1990
    %2109 = vmatprep.subr.mxu0 0.0
    %2110 = vmatpush1.msra.mxu0 %v1991
    %2111 = vmatprep.subr.mxu0 0.0
    %2112 = vmatpush1.msra.mxu0 %v1992
    %2113 = vmatprep.subr.mxu0 0.0
    %2114 = vmatpush1.msra.mxu0 %v1993
    %2115 = vmatprep.subr.mxu0 0.0
    %2116 = vmatpush1.msra.mxu0 %v1994
    %2117 = vmatprep.subr.mxu0 0.0
    %2118 = vmatpush1.msra.mxu0 %v1995
    %2119 = vmatprep.subr.mxu0 0.0
    %2120 = vmatpush1.msra.mxu0 %v1996
    %2121 = vmatprep.subr.mxu0 0.0
    %2122 = vmatpush1.msra.mxu0 %v1997
    %2123 = vmatprep.subr.mxu0 0.0
    %2124 = vmatpush1.msra.mxu0 %v1998
    %2125 = vmatprep.subr.mxu0 0.0
    %2126 = vmatpush1.msra.mxu0 %v1999
    %2127 = vmatprep.subr.mxu0 0.0
    %2128 = vmatpush1.msra.mxu0 %v2000
    %2129 = vmatprep.subr.mxu0 0.0
    %2130 = vmatpush1.msra.mxu0 %v2001
    %2131 = vmatprep.subr.mxu0 0.0
    %2132 = vmatpush1.msra.mxu0 %v2002
    %2133 = vmatprep.subr.mxu0 0.0
    %2134 = vmatpush1.msra.mxu0 %v2003
    %2135 = vmatprep.subr.mxu0 0.0
    %2136 = vmatpush1.msra.mxu0 %v2004
    %2137 = vmatprep.subr.mxu0 0.0
    %2138 = vmatpush1.msra.mxu0 %v2005
    %2139 = vmatprep.subr.mxu0 0.0
    %2140 = vmatpush1.msra.mxu0 %v2006
    %2141 = vmatprep.subr.mxu0 0.0
    %2142 = vmatpush1.msra.mxu0 %v2007
    %2143 = vmatprep.subr.mxu0 0.0
    %2144 = vmatpush1.msra.mxu0 %v2008
    %2145 = vmatprep.subr.mxu0 0.0
    %2146 = vmatpush1.msra.mxu0 %v2009
    %2147 = vmatprep.subr.mxu0 0.0
    %2148 = vmatpush1.msra.mxu0 %v2010
    %2149 = vmatprep.subr.mxu0 0.0
    %2150 = vmatpush1.msra.mxu0 %v2011
    %2151 = vmatprep.subr.mxu0 0.0
    %2152 = vmatpush1.msra.mxu0 %v2012
    %2153 = vmatprep.subr.mxu0 0.0
    %2154 = vmatpush1.msra.mxu0 %v2013
    %2155 = vmatprep.mubr.f32.mxu0 %v1885
    %2156 = vmatmul.mubr.f32.gmra.mrb[0].mxu0 %v1884
    %v2157 = vpop.f32.mrb[0].mxu0
    %v2158 = vadd.f32 %v2088, %v2157
    %v2159 = vpop.f32.mrb[0].mxu0
    %2160 = vdwg.mxu0
    %v2161 = vsel %vm221, %v2158, -inf
    %2162 = vmax.xlane.f32.xlu0 %v2161
    %v2163 = vpop.xlane.xlu0 %2162
    %v2164 = vsub.f32 %v2158, %v2163
    %v2165 = vmul.f32 %v2164, 1.442695
    %v2166 = vpow.pop %v2165
    %v2167 = vsel %vm221, %v2166, 0.0
    %2168 = vadd.xlane.f32.xlu0 %v2167
    %v2169 = vpop.xlane.xlu0 %2168
    %v2170 = vrcp.pop %v2169
    %v2171 = vmul.f32 %v2166, %v2170
    %2172 = vrot.lane.b32.xlu0 %v1143, 4
    %v2173 = vpop.permute.xlu0 %2172
    %vm2175 = vcmask 31744
    %v2176 = vsel %vm2175, %v1127, %v2173
    %vm2177 = vcmask 48128
    %v2178 = vsel %vm2177, %v2176, 0.0
    %vm2179 = vcmask 64512
    %2180 = vst.msk [vmem:[%s18] sm:$0xff] %vm2179, %v2178
    %2181 = vst.msk [vmem:[#allocation17] sm:$0xff] %vm221, %v2171
    // Predicated region
    $region110: #{vae_forward.1} parent=1 // pred_check
      _
    $region111: #{vae_forward.1} parent=1 // pred_check_branch
      %2183 = sbr.rel (0) target = $region113
    $region112: #{vae_forward.1} parent=1 // pred_region
      _
    $region113: #{vae_forward.1} parent=1 // pred_fallthru
      _
    // Predicated region
    $region114: #{vae_forward.1} parent=1 // pred_check
      _
    $region115: #{vae_forward.1} parent=1 // pred_check_branch
      %2185 = sbr.rel (0) target = $region117
    $region116: #{vae_forward.1} parent=1 // pred_region
      %s2187 = ssub.s32 128, 128
      %2188 = vsyncadd [#allocation4], %s2187
      %s2190 = sshll.u32 [#allocation17], 4
      %s2191 = int_to_ptr.vmem [resolvable:$true] %s2190
      %2193 = dma.vmem_to_hbm [thread:$0]  %s2191, 128, %s19, [#allocation4]
    $region117: #{vae_forward.1} parent=1 // pred_fallthru
      _
    // Predicated region
    $region118: #{vae_forward.1} parent=1 // pred_check
      _
    $region119: #{vae_forward.1} parent=1 // pred_check_branch
      %2195 = sbr.rel (0) target = $region121
    $region120: #{vae_forward.1} parent=1 // pred_region
      _
    $region121: #{vae_forward.1} parent=1 // pred_fallthru
      _
    // Predicated region
    $region122: #{vae_forward.1} parent=1 // pred_check
      _
    $region123: #{vae_forward.1} parent=1 // pred_check_branch
      %2197 = sbr.rel (0) target = $region125
    $region124: #{vae_forward.1} parent=1 // pred_region
      %2198 = dma.done [#allocation4], 128
    $region125: #{vae_forward.1} parent=1 // pred_fallthru
      _
    %2199 = vsyncpa [#allocation3], 1
    %2200 = vsyncpa [#allocation6], 1
    %2201 = vsyncpa [#allocation9], 1
    %2202 = vsyncpa [#allocation12], 1
    %2203 = vsyncpa [#allocation15], 1
    %2204 = vsyncpa [#allocation4], 1

</llo_original>
